<compile_context>
chip_gen: v6e
topology: v6e:2x2x1
jax: 0.10.0
libtpu: 0.0.40
codegen_flags: <defaults>
</compile_context>

<pallas_src>
import numpy as np
import jax
import jax.numpy as jnp
from jax.experimental import pallas as pl
from jax.experimental.pallas import tpu as pltpu


# ----------------------------------------------------------------------------
# Darknet config (mirrors create_modules of a small cfg)
# ----------------------------------------------------------------------------
# net: channels=4, height=16, width=16
#   0 conv 3x3 s1  4->8   bn leaky
#   1 conv 3x3 s2  8->16  bn leaky
#   2 conv 1x1 s1 16->16  bn leaky
#   3 shortcut from=[-2]               (WeightedFeatureFusion, unweighted)
#   4 conv 3x3 s2 16->32  bn leaky
#   5 upsample x2 (nearest)
#   6 route layers=[-1,-3]             (FeatureConcat -> channel concat)
#   7 conv 1x1 s1 48->32  bn leaky
#   8 conv 1x1 s1 32->21  linear (bias, no bn)   # 21 = na*(nc+5), na=3, nc=2
#   9 yolo (anchors=3, classes=2)                # training-mode output
CONV_DEFS = [
    # (cin, cout, k, stride, bn, activation)
    (4, 8, 3, 1, True, "leaky"),
    (8, 16, 3, 2, True, "leaky"),
    (16, 16, 1, 1, True, "leaky"),
    (16, 32, 3, 2, True, "leaky"),
    (48, 32, 1, 1, True, "leaky"),
    (32, 21, 1, 1, False, "linear"),
]
NA, NC = 3, 2
NO = NC + 5          # 7
LEAKY_SLOPE = 0.1
C0_PAD = 8           # input channels padded 4 -> 8 so input lanes = W0*C0_PAD = 128
OUT_LANES = 256      # final store padded from 8*21=168 to 256 lanes


def init_params(key):
    params = []
    for (cin, cout, k, stride, bn, act) in CONV_DEFS:
        key, kw_, kb, kg, kbt, km, kv = jax.random.split(key, 7)
        w = jax.random.normal(kw_, (cout, cin, k, k), jnp.float32) / np.sqrt(cin * k * k)
        if bn:
            gamma = 1.0 + 0.1 * jax.random.normal(kg, (cout,), jnp.float32)
            beta = 0.1 * jax.random.normal(kbt, (cout,), jnp.float32)
            mean = 0.1 * jax.random.normal(km, (cout,), jnp.float32)
            var = 1.0 + 0.1 * jax.random.uniform(kv, (cout,), jnp.float32)
            scale = gamma / jnp.sqrt(var + 1e-4)   # BatchNorm2d eps=0.0001 folded
            bias = beta - mean * scale
        else:
            scale = jnp.ones((cout,), jnp.float32)
            bias = 0.1 * jax.random.normal(kb, (cout,), jnp.float32)  # conv bias
        params.append(dict(w=w, scale=scale, bias=bias, stride=stride,
                           slope=LEAKY_SLOPE if act == "leaky" else None))
    return params


# ----------------------------------------------------------------------------
# Host-side constant building (done ONCE at model build time)
# ----------------------------------------------------------------------------

def build_constants(params, N, H0, W0, C0):
    """Fold BN into weights and express all spatial handling (3x3 taps, stride-2,
    2x nearest upsample, route concat) as constant GEMM operands in the lane-dense
    (N*H, W*C) layout.  The upsample is folded into R4 (rows) and K7a (columns).
    Everything is packed into three device buffers."""

    def fold(p):
        w = np.asarray(p["w"], np.float32)
        s = np.asarray(p["scale"], np.float32)
        b = np.asarray(p["bias"], np.float32)
        return w * s[:, None, None, None], b

    C0p = C0_PAD
    H1, W1 = H0, W0                  # conv0: 3x3 s1
    H2, W2 = H1 // 2, W1 // 2        # conv1: 3x3 s2
    H4, W4 = H2 // 2, W2 // 2        # conv4: 3x3 s2
    H5, W5 = H2, W2                  # 2x upsample of (H4, W4)

    w0, b0 = fold(params[0]); C1 = w0.shape[0]          # 8
    w1, b1 = fold(params[1]); C2 = w1.shape[0]          # 16
    w2, b2 = fold(params[2]); C3 = w2.shape[0]          # 16
    w4, b4 = fold(params[3]); C4 = w4.shape[0]          # 32
    w7, b7 = fold(params[4]); C7 = w7.shape[0]          # 32
    w8, b8 = fold(params[5]); C8 = w8.shape[0]          # 21

    def stacked_S(wf, Win, Cin_pad, Wo, stride):
        """Width taps + scale-folded weights, stacked over the 3 kernel rows:
        shape (3*Win*Cin_pad, Wo*Cout)."""
        cout, cin = wf.shape[0], wf.shape[1]
        S = np.zeros((3, Win * Cin_pad, Wo * cout), np.float32)
        for i in range(3):
            for j in range(3):
                for wo in range(Wo):
                    wi = stride * wo + j - 1
                    if 0 <= wi < Win:
                        S[i, wi * Cin_pad:wi * Cin_pad + cin,
                             wo * cout:(wo + 1) * cout] = wf[:, :, i, j].T
        return S.reshape(3 * Win * Cin_pad, Wo * cout)

    def stacked_R(Hin, Ho, stride, row_rep=1):
        """0/1 height-tap gather, stacked over the 3 kernel rows.  row_rep=2 folds
        the 2x nearest row-upsample into the gather (exact)."""
        R = np.zeros((3, N * Ho * row_rep, N * Hin), np.float32)
        for i in range(3):
            for n in range(N):
                for hr in range(Ho * row_rep):
                    hi = stride * (hr // row_rep) + i - 1
                    if 0 <= hi < Hin:
                        R[i, n * Ho * row_rep + hr, n * Hin + hi] = 1.0
        return R.reshape(3 * N * Ho * row_rep, N * Hin)

    S0 = stacked_S(w0, W0, C0p, W1, 1)        # (384, 128)
    R0 = stacked_R(H0, H1, 1)                 # (96, 32)
    S1 = stacked_S(w1, W1, C1, W2, 2)         # (384, 128)
    R1 = stacked_R(H1, H2, 2)                 # (48, 32)
    S4 = stacked_S(w4, W2, C3, W4, 2)         # (384, 128)
    R4 = stacked_R(H2, H4, 2, row_rep=2)      # (48, 16)  row-upsample folded in

    def kron1x1(w2d, Wsp):                    # 1x1 conv in (.., W*C) layout
        return np.kron(np.eye(Wsp, dtype=np.float32), w2d.T.astype(np.float32))

    K2 = kron1x1(w2[:, :, 0, 0], W2)          # (128, 128)

    # layers 6+7: route([-1,-3]) + 1x1 conv 48->32.  Concat realized by splitting
    # layer-7's K over the two sources; 2x column-upsample folded into K7a.
    w7a, w7b = w7[:, :C4, 0, 0], w7[:, C4:, 0, 0]
    K7a = np.zeros((W4 * C4, W5 * C7), np.float32)
    for wo in range(W5):
        wi = wo // 2
        K7a[wi * C4:(wi + 1) * C4, wo * C7:(wo + 1) * C7] = w7a.T
    K7b = kron1x1(w7b, W5)                    # (128, 256)

    # layer 8: final linear 1x1 conv; output lanes padded 168 -> 256
    K8 = np.zeros((W5 * C7, OUT_LANES), np.float32)
    K8[:, :W5 * C8] = kron1x1(w8[:, :, 0, 0], W5)

    # ---- pack into slabs -----------------------------------------------------
    offs128, c128_rows, rptr = {}, [], 0
    def put128(name, mat):
        nonlocal rptr
        offs128[name] = (rptr, mat.shape[0], mat.shape[1])
        rptr += mat.shape[0]
        if mat.shape[1] < 128:
            mat = np.concatenate(
                [mat, np.zeros((mat.shape[0], 128 - mat.shape[1]), np.float32)], axis=1)
        c128_rows.append(mat)
    put128("S0", S0); put128("S1", S1); put128("S4", S4); put128("K2", K2)
    put128("R0", R0); put128("R1", R1); put128("R4", R4)
    c128 = np.concatenate(c128_rows, axis=0)            # (1472, 128) bf16 slab

    offs256, c256_rows, rptr = {}, [], 0
    def put256(name, mat):
        nonlocal rptr
        offs256[name] = (rptr, mat.shape[0])
        rptr += mat.shape[0]
        c256_rows.append(mat)
    put256("K7a", K7a); put256("K7b", K7b); put256("K8", K8)
    c256 = np.concatenate(c256_rows, axis=0)             # (512, 256) bf16 slab

    biases = np.zeros((8, OUT_LANES), np.float32)         # f32 bias slab
    biases[0, :W1 * C1] = np.tile(b0, W1)
    biases[1, :W2 * C2] = np.tile(b1, W2)
    biases[2, :W2 * C3] = np.tile(b2, W2)
    biases[3, :W4 * C4] = np.tile(b4, W4)
    biases[4, :W5 * C7] = np.tile(b7, W5)
    biases[5, :W5 * C8] = np.tile(b8, W5)

    arrays = (jnp.asarray(c128, jnp.bfloat16),
              jnp.asarray(c256, jnp.bfloat16),
              jnp.asarray(biases, jnp.float32))
    dims = dict(N=N, H0=H0, W0=W0, C0=C0, C0p=C0p,
                H1=H1, W1=W1, C1=C1, H2=H2, W2=W2, C2=C2, C3=C3,
                H4=H4, W4=W4, C4=C4, H5=H5, W5=W5, C7=C7, C8=C8,
                offs128=offs128, offs256=offs256)
    return arrays, dims


# ----------------------------------------------------------------------------
# Fused Pallas kernel: whole Darknet forward in one program, VMEM-resident.
# ----------------------------------------------------------------------------

def _make_kernel(dims):
    o128, o256 = dims["offs128"], dims["offs256"]
    N = dims["N"]
    NH1, NH2, NH5 = N * dims["H1"], N * dims["H2"], N * dims["H5"]
    L0 = dims["W1"] * dims["C1"]     # 128
    L1 = dims["W2"] * dims["C2"]     # 128
    L2 = dims["W2"] * dims["C3"]     # 128
    L4 = dims["W4"] * dims["C4"]     # 128

    def kernel(x_ref, c128_ref, c256_ref, b_ref, o_ref):
        def cut128(name):
            r0, nr, w = o128[name]
            return c128_ref[r0:r0 + nr, 0:w] if w < 128 else c128_ref[r0:r0 + nr, :]

        def cut256(name):
            r0, nr = o256[name]
            return c256_ref[r0:r0 + nr, :]

        def mm(a, b):    # bf16 MXU operands, f32 accumulation
            return jnp.dot(a.astype(jnp.bfloat16), b.astype(jnp.bfloat16),
                           preferred_element_type=jnp.float32)

        def leaky(y):    # f32 epilogue
            return jnp.where(y >= 0, y, LEAKY_SLOPE * y)

        def taps(gathered, rows):
            # (3*rows, L) stacked height-tap gather -> lane-concat (rows, 3*L)
            return jnp.concatenate(
                [gathered[0:rows], gathered[rows:2 * rows], gathered[2 * rows:3 * rows]],
                axis=-1)

        x0 = x_ref[...]                                            # (N*16, 128) bf16

        # 0: 3x3 s1 conv 4->8   -> one gather GEMM + one stacked-S GEMM
        t0 = taps(mm(cut128("R0"), x0), NH1)                       # (32, 384)
        a0 = leaky(mm(t0, cut128("S0")) + b_ref[0:1, 0:L0])        # (32, 128)

        # 1: 3x3 s2 conv 8->16
        t1 = taps(mm(cut128("R1"), a0), NH2)                       # (16, 384)
        a1 = leaky(mm(t1, cut128("S1")) + b_ref[1:2, 0:L1])        # (16, 128)

        # 2: 1x1 conv 16->16
        a2 = leaky(mm(a1, cut128("K2")) + b_ref[2:3, 0:L2])        # (16, 128)

        # 3: shortcut from=[-2]  (f32 residual add, no extra bf16 round-trip)
        a3 = a2 + a1                                               # (16, 128)

        # 4+5: 3x3 s2 conv 16->32 with the 2x nearest ROW-upsample folded into the
        #      height taps (bias/leaky commute with row duplication -> exact).
        t4 = taps(mm(cut128("R4"), a3), NH5)                       # (16, 384)
        a4 = leaky(mm(t4, cut128("S4")) + b_ref[3:4, 0:L4])        # (16, 128)

        # 6+7: route([-1,-3]) + 1x1 conv 48->32; concat realized by splitting
        #      layer-7's K; the 2x COLUMN-upsample is folded into K7a.
        a7 = leaky(mm(a4, cut256("K7a")) + mm(a3, cut256("K7b")) + b_ref[4:5, :])

        # 8: 1x1 conv 32->21, linear; output lanes zero-padded to 256 (full vst).
        o_ref[...] = (mm(a7, cut256("K8")) + b_ref[5:6, :]).astype(o_ref.dtype)

    return kernel


def make_darknet_forward(params, input_shape):
    """Build once (constants folded/packed, device-resident), return a jitted
    forward(x_nchw) reproducing Darknet.forward in training mode."""
    N, C0, H0, W0 = input_shape
    (c128, c256, biases), dims = build_constants(params, N, H0, W0, C0)
    kernel = _make_kernel(dims)
    C0p, H5, W5, C8 = dims["C0p"], dims["H5"], dims["W5"], dims["C8"]

    call = pl.pallas_call(
        kernel,
        out_shape=jax.ShapeDtypeStruct((N * H5, OUT_LANES), jnp.float32),
        in_specs=[pl.BlockSpec(memory_space=pltpu.MemorySpace.VMEM)] * 4,
        out_specs=pl.BlockSpec(memory_space=pltpu.MemorySpace.VMEM),
    )
    # No grid: single program, whole problem is VMEM-resident.  With much larger
    # batches, add a leading "parallel" grid axis (v7x: 2 TCs) — not needed at N=2.

    @jax.jit
    def forward(x_nchw):
        # NCHW -> lane-dense (N*H, W*Cpad) bf16; channel pad 4->8 => 128 lanes.
        x = jnp.transpose(x_nchw, (0, 2, 3, 1))
        x = jnp.pad(x, ((0, 0), (0, 0), (0, 0), (0, C0p - C0)))
        x0 = x.reshape(N * H0, W0 * C0p).astype(jnp.bfloat16)
        out = call(x0, c128, c256, biases)
        # 9 YOLO (training mode): drop lane padding, then (bs, na, ny, nx, no)
        p = out[:, :W5 * C8].reshape(N, H5, W5, NA, NO).transpose(0, 3, 1, 2, 4)
        return [p]

    return forward


# ----------------------------------------------------------------------------
# Pure-JAX reference (lax.conv, f32 HIGHEST) with identical semantics
# ----------------------------------------------------------------------------

def ref_conv_bn_act(x, p):
    w = p["w"]
    _, _, kh, _ = w.shape
    pad = kh // 2
    w_hwio = jnp.transpose(w, (2, 3, 1, 0))
    y = jax.lax.conv_general_dilated(
        x, w_hwio, (p["stride"], p["stride"]),
        padding=[(pad, pad), (pad, pad)],
        dimension_numbers=("NHWC", "HWIO", "NHWC"),
        precision=jax.lax.Precision.HIGHEST,
    )
    y = y * p["scale"] + p["bias"]
    if p["slope"] is not None:
        y = jnp.where(y >= 0, y, p["slope"] * y)
    return y


def ref_darknet_forward(x_nchw, params):
    x = jnp.transpose(x_nchw, (0, 2, 3, 1))  # NCHW -> NHWC
    out = []
    x = ref_conv_bn_act(x, params[0]); out.append(x)                     # 0
    x = ref_conv_bn_act(x, params[1]); out.append(x)                     # 1
    x = ref_conv_bn_act(x, params[2]); out.append(x)                     # 2
    x = x + out[1]; out.append(x)                                        # 3 shortcut [-2]
    x = ref_conv_bn_act(x, params[3]); out.append(x)                     # 4
    x = jnp.repeat(jnp.repeat(x, 2, axis=1), 2, axis=2); out.append(x)   # 5 upsample x2
    x = jnp.concatenate([out[5], out[3]], axis=-1); out.append(x)        # 6 route [-1,-3]
    x = ref_conv_bn_act(x, params[4]); out.append(x)                     # 7
    x = ref_conv_bn_act(x, params[5]); out.append(x)                     # 8
    N, H, W, _ = x.shape
    p = x.reshape(N, H, W, NA, NO)
    p = jnp.transpose(p, (0, 3, 1, 2, 4))                                # (bs,na,ny,nx,no)
    return [p]


# ----------------------------------------------------------------------------
# Main
# ----------------------------------------------------------------------------

if __name__ == "__main__":
    key = jax.random.PRNGKey(0)
    kx, kp = jax.random.split(key)
    # PyTorch input convention: NCHW, (batch=2, channels=4, H=16, W=16)
    x = jax.random.normal(kx, (2, 4, 16, 16), jnp.float32)
    params = init_params(kp)

    forward = make_darknet_forward(params, x.shape)   # constants built & cached once
    yolo_out = forward(x)
    yolo_out = [jax.block_until_ready(p) for p in yolo_out]

    ref_out = ref_darknet_forward(x, params)
    ref_out = [jax.block_until_ready(p) for p in ref_out]

    assert len(yolo_out) == 1
    assert yolo_out[0].shape == (2, NA, 8, 8, NO), yolo_out[0].shape
    for got, ref in zip(yolo_out, ref_out):
        # bf16 MXU inputs (f32 accumulation/epilogue) -> slightly looser tolerance.
        np.testing.assert_allclose(np.asarray(got), np.asarray(ref),
                                   rtol=3e-2, atol=3e-2)

    print("KERNEL_OK")
</pallas_src>

<mosaic_0001>
module attributes {stable_mosaic.version = 11 : i64} {
  func.func @kernel(%arg0: memref<32x128xbf16, #tpu.memory_space<vmem>>, %arg1: memref<1472x128xbf16, #tpu.memory_space<vmem>>, %arg2: memref<512x256xbf16, #tpu.memory_space<vmem>>, %arg3: memref<8x256xf32, #tpu.memory_space<vmem>>, %arg4: memref<16x256xf32, #tpu.memory_space<vmem>>) attributes {dimension_semantics = [], scalar_prefetch = 0 : i64, scratch_operands = 0 : i64, tpu.core_type = #tpu.core_type<tc>} {
    %c0 = arith.constant 0 : index
    %c0_0 = arith.constant 0 : index
    %0 = vector.load %arg0[%c0, %c0_0] : memref<32x128xbf16, #tpu.memory_space<vmem>>, vector<32x128xbf16>
    %c1280 = arith.constant 1280 : index
    %c0_1 = arith.constant 0 : index
    %1 = vector.load %arg1[%c1280, %c0_1] : memref<1472x128xbf16, #tpu.memory_space<vmem>>, vector<96x32xbf16>
    %cst = arith.constant dense<0.000000e+00> : vector<96x128xf32>
    %2 = tpu.matmul %1, %0, %cst {dimension_numbers = #tpu.dot_dimension_numbers<[1], [0], [0], [1], [0, 0, 1, 1], [], []>} : vector<96x32xbf16>, vector<32x128xbf16>, vector<96x128xf32> -> vector<96x128xf32>
    %3 = vector.extract_strided_slice %2 {offsets = [0, 0], sizes = [32, 128], strides = [1, 1]} : vector<96x128xf32> to vector<32x128xf32>
    %4 = vector.extract_strided_slice %2 {offsets = [32, 0], sizes = [32, 128], strides = [1, 1]} : vector<96x128xf32> to vector<32x128xf32>
    %5 = vector.extract_strided_slice %2 {offsets = [64, 0], sizes = [32, 128], strides = [1, 1]} : vector<96x128xf32> to vector<32x128xf32>
    %6 = tpu.concatenate %3, %4, %5 in 1 : vector<32x128xf32>, vector<32x128xf32>, vector<32x128xf32> -> vector<32x384xf32>
    %c0_2 = arith.constant 0 : index
    %c0_3 = arith.constant 0 : index
    %7 = vector.load %arg1[%c0_2, %c0_3] : memref<1472x128xbf16, #tpu.memory_space<vmem>>, vector<384x128xbf16>
    %8 = arith.truncf %6 : vector<32x384xf32> to vector<32x384xbf16>
    %cst_4 = arith.constant dense<0.000000e+00> : vector<32x128xf32>
    %9 = tpu.matmul %8, %7, %cst_4 {dimension_numbers = #tpu.dot_dimension_numbers<[1], [0], [0], [1], [0, 0, 1, 1], [], []>} : vector<32x384xbf16>, vector<384x128xbf16>, vector<32x128xf32> -> vector<32x128xf32>
    %c0_5 = arith.constant 0 : index
    %c0_6 = arith.constant 0 : index
    %10 = vector.load %arg3[%c0_5, %c0_6] : memref<8x256xf32, #tpu.memory_space<vmem>>, vector<1x128xf32>
    %11 = vector.broadcast %10 : vector<1x128xf32> to vector<32x128xf32>
    %12 = arith.addf %9, %11 : vector<32x128xf32>
    %cst_7 = arith.constant 0.000000e+00 : f32
    %13 = vector.broadcast %cst_7 : f32 to vector<32x128xf32>
    %14 = arith.cmpf oge, %12, %13 : vector<32x128xf32>
    %cst_8 = arith.constant 1.000000e-01 : f32
    %15 = vector.broadcast %cst_8 : f32 to vector<32x128xf32>
    %16 = arith.mulf %15, %12 : vector<32x128xf32>
    %17 = arith.select %14, %12, %16 : vector<32x128xi1>, vector<32x128xf32>
    %c1376 = arith.constant 1376 : index
    %c0_9 = arith.constant 0 : index
    %18 = vector.load %arg1[%c1376, %c0_9] : memref<1472x128xbf16, #tpu.memory_space<vmem>>, vector<48x32xbf16>
    %19 = arith.truncf %17 : vector<32x128xf32> to vector<32x128xbf16>
    %cst_10 = arith.constant dense<0.000000e+00> : vector<48x128xf32>
    %20 = tpu.matmul %18, %19, %cst_10 {dimension_numbers = #tpu.dot_dimension_numbers<[1], [0], [0], [1], [0, 0, 1, 1], [], []>} : vector<48x32xbf16>, vector<32x128xbf16>, vector<48x128xf32> -> vector<48x128xf32>
    %21 = vector.extract_strided_slice %20 {offsets = [0, 0], sizes = [16, 128], strides = [1, 1]} : vector<48x128xf32> to vector<16x128xf32>
    %22 = vector.extract_strided_slice %20 {offsets = [16, 0], sizes = [16, 128], strides = [1, 1]} : vector<48x128xf32> to vector<16x128xf32>
    %23 = vector.extract_strided_slice %20 {offsets = [32, 0], sizes = [16, 128], strides = [1, 1]} : vector<48x128xf32> to vector<16x128xf32>
    %24 = tpu.concatenate %21, %22, %23 in 1 : vector<16x128xf32>, vector<16x128xf32>, vector<16x128xf32> -> vector<16x384xf32>
    %c384 = arith.constant 384 : index
    %c0_11 = arith.constant 0 : index
    %25 = vector.load %arg1[%c384, %c0_11] : memref<1472x128xbf16, #tpu.memory_space<vmem>>, vector<384x128xbf16>
    %26 = arith.truncf %24 : vector<16x384xf32> to vector<16x384xbf16>
    %cst_12 = arith.constant dense<0.000000e+00> : vector<16x128xf32>
    %27 = tpu.matmul %26, %25, %cst_12 {dimension_numbers = #tpu.dot_dimension_numbers<[1], [0], [0], [1], [0, 0, 1, 1], [], []>} : vector<16x384xbf16>, vector<384x128xbf16>, vector<16x128xf32> -> vector<16x128xf32>
    %c1 = arith.constant 1 : index
    %c0_13 = arith.constant 0 : index
    %28 = vector.load %arg3[%c1, %c0_13] : memref<8x256xf32, #tpu.memory_space<vmem>>, vector<1x128xf32>
    %29 = vector.broadcast %28 : vector<1x128xf32> to vector<16x128xf32>
    %30 = arith.addf %27, %29 : vector<16x128xf32>
    %cst_14 = arith.constant 0.000000e+00 : f32
    %31 = vector.broadcast %cst_14 : f32 to vector<16x128xf32>
    %32 = arith.cmpf oge, %30, %31 : vector<16x128xf32>
    %cst_15 = arith.constant 1.000000e-01 : f32
    %33 = vector.broadcast %cst_15 : f32 to vector<16x128xf32>
    %34 = arith.mulf %33, %30 : vector<16x128xf32>
    %35 = arith.select %32, %30, %34 : vector<16x128xi1>, vector<16x128xf32>
    %c1152 = arith.constant 1152 : index
    %c0_16 = arith.constant 0 : index
    %36 = vector.load %arg1[%c1152, %c0_16] : memref<1472x128xbf16, #tpu.memory_space<vmem>>, vector<128x128xbf16>
    %37 = arith.truncf %35 : vector<16x128xf32> to vector<16x128xbf16>
    %cst_17 = arith.constant dense<0.000000e+00> : vector<16x128xf32>
    %38 = tpu.matmul %37, %36, %cst_17 {dimension_numbers = #tpu.dot_dimension_numbers<[1], [0], [0], [1], [0, 0, 1, 1], [], []>} : vector<16x128xbf16>, vector<128x128xbf16>, vector<16x128xf32> -> vector<16x128xf32>
    %c2 = arith.constant 2 : index
    %c0_18 = arith.constant 0 : index
    %39 = vector.load %arg3[%c2, %c0_18] : memref<8x256xf32, #tpu.memory_space<vmem>>, vector<1x128xf32>
    %40 = vector.broadcast %39 : vector<1x128xf32> to vector<16x128xf32>
    %41 = arith.addf %38, %40 : vector<16x128xf32>
    %cst_19 = arith.constant 0.000000e+00 : f32
    %42 = vector.broadcast %cst_19 : f32 to vector<16x128xf32>
    %43 = arith.cmpf oge, %41, %42 : vector<16x128xf32>
    %cst_20 = arith.constant 1.000000e-01 : f32
    %44 = vector.broadcast %cst_20 : f32 to vector<16x128xf32>
    %45 = arith.mulf %44, %41 : vector<16x128xf32>
    %46 = arith.select %43, %41, %45 : vector<16x128xi1>, vector<16x128xf32>
    %47 = arith.addf %46, %35 : vector<16x128xf32>
    %c1424 = arith.constant 1424 : index
    %c0_21 = arith.constant 0 : index
    %48 = vector.load %arg1[%c1424, %c0_21] : memref<1472x128xbf16, #tpu.memory_space<vmem>>, vector<48x16xbf16>
    %49 = arith.truncf %47 : vector<16x128xf32> to vector<16x128xbf16>
    %cst_22 = arith.constant dense<0.000000e+00> : vector<48x128xf32>
    %50 = tpu.matmul %48, %49, %cst_22 {dimension_numbers = #tpu.dot_dimension_numbers<[1], [0], [0], [1], [0, 0, 1, 1], [], []>} : vector<48x16xbf16>, vector<16x128xbf16>, vector<48x128xf32> -> vector<48x128xf32>
    %51 = vector.extract_strided_slice %50 {offsets = [0, 0], sizes = [16, 128], strides = [1, 1]} : vector<48x128xf32> to vector<16x128xf32>
    %52 = vector.extract_strided_slice %50 {offsets = [16, 0], sizes = [16, 128], strides = [1, 1]} : vector<48x128xf32> to vector<16x128xf32>
    %53 = vector.extract_strided_slice %50 {offsets = [32, 0], sizes = [16, 128], strides = [1, 1]} : vector<48x128xf32> to vector<16x128xf32>
    %54 = tpu.concatenate %51, %52, %53 in 1 : vector<16x128xf32>, vector<16x128xf32>, vector<16x128xf32> -> vector<16x384xf32>
    %c768 = arith.constant 768 : index
    %c0_23 = arith.constant 0 : index
    %55 = vector.load %arg1[%c768, %c0_23] : memref<1472x128xbf16, #tpu.memory_space<vmem>>, vector<384x128xbf16>
    %56 = arith.truncf %54 : vector<16x384xf32> to vector<16x384xbf16>
    %cst_24 = arith.constant dense<0.000000e+00> : vector<16x128xf32>
    %57 = tpu.matmul %56, %55, %cst_24 {dimension_numbers = #tpu.dot_dimension_numbers<[1], [0], [0], [1], [0, 0, 1, 1], [], []>} : vector<16x384xbf16>, vector<384x128xbf16>, vector<16x128xf32> -> vector<16x128xf32>
    %c3 = arith.constant 3 : index
    %c0_25 = arith.constant 0 : index
    %58 = vector.load %arg3[%c3, %c0_25] : memref<8x256xf32, #tpu.memory_space<vmem>>, vector<1x128xf32>
    %59 = vector.broadcast %58 : vector<1x128xf32> to vector<16x128xf32>
    %60 = arith.addf %57, %59 : vector<16x128xf32>
    %cst_26 = arith.constant 0.000000e+00 : f32
    %61 = vector.broadcast %cst_26 : f32 to vector<16x128xf32>
    %62 = arith.cmpf oge, %60, %61 : vector<16x128xf32>
    %cst_27 = arith.constant 1.000000e-01 : f32
    %63 = vector.broadcast %cst_27 : f32 to vector<16x128xf32>
    %64 = arith.mulf %63, %60 : vector<16x128xf32>
    %65 = arith.select %62, %60, %64 : vector<16x128xi1>, vector<16x128xf32>
    %c0_28 = arith.constant 0 : index
    %c0_29 = arith.constant 0 : index
    %66 = vector.load %arg2[%c0_28, %c0_29] : memref<512x256xbf16, #tpu.memory_space<vmem>>, vector<128x256xbf16>
    %67 = arith.truncf %65 : vector<16x128xf32> to vector<16x128xbf16>
    %cst_30 = arith.constant dense<0.000000e+00> : vector<16x256xf32>
    %68 = tpu.matmul %67, %66, %cst_30 {dimension_numbers = #tpu.dot_dimension_numbers<[1], [0], [0], [1], [0, 0, 1, 1], [], []>} : vector<16x128xbf16>, vector<128x256xbf16>, vector<16x256xf32> -> vector<16x256xf32>
    %c128 = arith.constant 128 : index
    %c0_31 = arith.constant 0 : index
    %69 = vector.load %arg2[%c128, %c0_31] : memref<512x256xbf16, #tpu.memory_space<vmem>>, vector<128x256xbf16>
    %70 = arith.truncf %47 : vector<16x128xf32> to vector<16x128xbf16>
    %cst_32 = arith.constant dense<0.000000e+00> : vector<16x256xf32>
    %71 = tpu.matmul %70, %69, %cst_32 {dimension_numbers = #tpu.dot_dimension_numbers<[1], [0], [0], [1], [0, 0, 1, 1], [], []>} : vector<16x128xbf16>, vector<128x256xbf16>, vector<16x256xf32> -> vector<16x256xf32>
    %72 = arith.addf %68, %71 : vector<16x256xf32>
    %c4 = arith.constant 4 : index
    %c0_33 = arith.constant 0 : index
    %73 = vector.load %arg3[%c4, %c0_33] : memref<8x256xf32, #tpu.memory_space<vmem>>, vector<1x256xf32>
    %74 = vector.broadcast %73 : vector<1x256xf32> to vector<16x256xf32>
    %75 = arith.addf %72, %74 : vector<16x256xf32>
    %cst_34 = arith.constant 0.000000e+00 : f32
    %76 = vector.broadcast %cst_34 : f32 to vector<16x256xf32>
    %77 = arith.cmpf oge, %75, %76 : vector<16x256xf32>
    %cst_35 = arith.constant 1.000000e-01 : f32
    %78 = vector.broadcast %cst_35 : f32 to vector<16x256xf32>
    %79 = arith.mulf %78, %75 : vector<16x256xf32>
    %80 = arith.select %77, %75, %79 : vector<16x256xi1>, vector<16x256xf32>
    %c256 = arith.constant 256 : index
    %c0_36 = arith.constant 0 : index
    %81 = vector.load %arg2[%c256, %c0_36] : memref<512x256xbf16, #tpu.memory_space<vmem>>, vector<256x256xbf16>
    %82 = arith.truncf %80 : vector<16x256xf32> to vector<16x256xbf16>
    %cst_37 = arith.constant dense<0.000000e+00> : vector<16x256xf32>
    %83 = tpu.matmul %82, %81, %cst_37 {dimension_numbers = #tpu.dot_dimension_numbers<[1], [0], [0], [1], [0, 0, 1, 1], [], []>} : vector<16x256xbf16>, vector<256x256xbf16>, vector<16x256xf32> -> vector<16x256xf32>
    %c5 = arith.constant 5 : index
    %c0_38 = arith.constant 0 : index
    %84 = vector.load %arg3[%c5, %c0_38] : memref<8x256xf32, #tpu.memory_space<vmem>>, vector<1x256xf32>
    %85 = vector.broadcast %84 : vector<1x256xf32> to vector<16x256xf32>
    %86 = arith.addf %83, %85 : vector<16x256xf32>
    %c0_39 = arith.constant 0 : index
    %c0_40 = arith.constant 0 : index
    %87 = vector.load %arg4[%c0_39, %c0_40] : memref<16x256xf32, #tpu.memory_space<vmem>>, vector<16x256xf32>
    tpu.vector_store %arg4[%c0_39, %c0_40], %86 {strides = array<i32>} : memref<16x256xf32, #tpu.memory_space<vmem>>, vector<16x256xf32>,
    return
  }
}

</mosaic_0001>

<llo_original>
// kernel: forward.1
$region0: #{forward.1}
  #allocation0 [shape = 'u32[]', space=smem, size = 0x4, offset = 0x4, fixed_abs, tag = 'smem constant byte address 0x4 - core index']
  #allocation1 [shape = 'u32[144,128]{1,0:T(1,128)}', space=vmem, size = 0x12000, scoped, tag = 'internal scratch']
  %s0 = inlined_call_operand.vmem [shape: bf16[32,128], index: 0, kind: input, shape index: {}]
  %s1 = inlined_call_operand.vmem [shape: bf16[1472,128], index: 1, kind: input, shape index: {}]
  %s2 = inlined_call_operand.hbm [shape: bf16[512,256], index: 2, kind: input, shape index: {}]
  %s3 = inlined_call_operand.vmem [shape: f32[8,256], index: 3, kind: input, shape index: {}]
  %s4 = inlined_call_operand.vmem [shape: f32[16,256], index: 4, kind: output, shape index: {}]
  %s5 = sld [smem:[#allocation0]]
  $region30: #{forward.1} parent=0
    _
  %s7 = ssub.s32 1, %s5
  %s8 = scalar_select 0, %s7, %s5
  $region1: #{forward.1} parent=0
    #allocation2 [shape = 'u8[262144]{0}', space=vmem, size = 0x40000, scoped, tag = 'input window, operand 2, single buffered']
    #allocation3 [shape = 's32[1]{0}', space=sflag, size = 0x4, scoped, tag = 'scoped memory for forward.1']
    %9 = vsyncpa [#allocation3], 0
    // Predicated region
    $region2: #{forward.1} parent=1 // pred_check
      _
    $region3: #{forward.1} parent=1 // pred_check_branch
      %11 = sbr.rel (0) target = $region5
    $region4: #{forward.1} parent=1 // pred_region
      _
    $region5: #{forward.1} parent=1 // pred_fallthru
      _
    // Predicated region
    $region6: #{forward.1} parent=1 // pred_check
      _
    $region7: #{forward.1} parent=1 // pred_check_branch
      %13 = sbr.rel (0) target = $region9
    $region8: #{forward.1} parent=1 // pred_region
      _
    $region9: #{forward.1} parent=1 // pred_fallthru
      _
    // Predicated region
    $region10: #{forward.1} parent=1 // pred_check
      _
    $region11: #{forward.1} parent=1 // pred_check_branch
      %15 = sbr.rel (0) target = $region13
    $region12: #{forward.1} parent=1 // pred_region
      %s17 = ssub.s32 8192, 8192
      %18 = vsyncadd [#allocation3], %s17
      %s19 = sshll.u32 [#allocation2], 4
      %s20 = int_to_ptr.vmem [resolvable:$true] %s19
      %25 = dma.hbm_to_vmem [thread:$0]  %s2, 8192, %s20, [#allocation3], 128, 128, 8
    $region13: #{forward.1} parent=1 // pred_fallthru
      _
    // Predicated region
    $region14: #{forward.1} parent=1 // pred_check
      _
    $region15: #{forward.1} parent=1 // pred_check_branch
      %27 = sbr.rel (0) target = $region17
    $region16: #{forward.1} parent=1 // pred_region
      _
    $region17: #{forward.1} parent=1 // pred_fallthru
      _
    // Predicated region
    $region18: #{forward.1} parent=1 // pred_check
      _
    $region19: #{forward.1} parent=1 // pred_check_branch
      %29 = sbr.rel (0) target = $region21
    $region20: #{forward.1} parent=1 // pred_region
      %30 = dma.done [#allocation3], 8192
    $region21: #{forward.1} parent=1 // pred_fallthru
      _
    %v32 = vld [vmem:[%s0] sm:$0xf]
    %v33 = vld [vmem:[%s0 + $0x4] sm:$0xf]
    %v34 = vld [vmem:[%s0 + $0x8] sm:$0xf]
    %v35 = vld [vmem:[%s0 + $0xc] sm:$0xf]
    %v36 = vld [vmem:[%s1 + $0x280] sm:$0xf]
    %v37 = vld [vmem:[%s1 + $0x284] sm:$0xf]
    %v38 = vld [vmem:[%s1 + $0x288] sm:$0xf]
    %v39 = vld [vmem:[%s1 + $0x28c] sm:$0xf]
    %v40 = vld [vmem:[%s1 + $0x290] sm:$0xf]
    %v41 = vld [vmem:[%s1 + $0x294] sm:$0xf]
    %v42 = vld [vmem:[%s1 + $0x298] sm:$0xf]
    %v43 = vld [vmem:[%s1 + $0x29c] sm:$0xf]
    %v44 = vld [vmem:[%s1 + $0x2a0] sm:$0xf]
    %v45 = vld [vmem:[%s1 + $0x2a4] sm:$0xf]
    %v46 = vld [vmem:[%s1 + $0x2a8] sm:$0xf]
    %v47 = vld [vmem:[%s1 + $0x2ac] sm:$0xf]
    %v60 = vunpack.c.l.b16 %v36
    %v61 = vunpack.c.l.b16 %v37
    %v62 = vunpack.c.l.b16 %v38
    %v63 = vunpack.c.l.b16 %v39
    %v64 = vunpack.c.l.b16 %v40
    %v65 = vunpack.c.l.b16 %v41
    %v66 = vunpack.c.l.b16 %v42
    %v67 = vunpack.c.l.b16 %v43
    %v68 = vunpack.c.l.b16 %v44
    %v69 = vunpack.c.l.b16 %v45
    %v70 = vunpack.c.l.b16 %v46
    %v71 = vunpack.c.l.b16 %v47
    %v72 = vpack.c.b16 %v61, %v60
    %v73 = vpack.c.b16 %v63, %v62
    %v74 = vpack.c.b16 %v65, %v64
    %v75 = vpack.c.b16 %v67, %v66
    %v76 = vpack.c.b16 %v69, %v68
    %v77 = vpack.c.b16 %v71, %v70
    %v82 = vunpack.c.l.b16 %v32
    %v83 = vunpack.c.l.b16 %v33
    %v84 = vunpack.c.l.b16 %v34
    %v85 = vunpack.c.l.b16 %v35
    %v86 = vpack.c.b16 %v83, %v82
    %v87 = vpack.c.b16 %v85, %v84
    %vm90 = vcmask 261120
    %v92 = vsel %vm90, %v72, 0
    %v95 = vsel %vm90, %v73, 0
    %v98 = vsel %vm90, %v74, 0
    %v101 = vsel %vm90, %v75, 0
    %v104 = vsel %vm90, %v76, 0
    %v107 = vsel %vm90, %v77, 0
    %109 = vmatprep.subr.bf16.mxu0 0
    %110 = vmatpush1.bf16.msra.mxu0 0
    %111 = vmatprep.subr.bf16.mxu0 0
    %112 = vmatpush1.bf16.msra.mxu0 0
    %113 = vmatprep.subr.bf16.mxu0 0
    %114 = vmatpush1.bf16.msra.mxu0 0
    %115 = vmatprep.subr.bf16.mxu0 0
    %116 = vmatpush1.bf16.msra.mxu0 0
    %117 = vmatprep.subr.bf16.mxu0 0
    %118 = vmatpush1.bf16.msra.mxu0 0
    %119 = vmatprep.subr.bf16.mxu0 0
    %120 = vmatpush1.bf16.msra.mxu0 0
    %121 = vmatprep.subr.bf16.mxu0 0
    %122 = vmatpush1.bf16.msra.mxu0 %v87
    %123 = vmatprep.subr.bf16.mxu0 0
    %124 = vmatpush1.bf16.msra.mxu0 %v86
    %125 = vmatprep.subr.bf16.mxu0 0
    %126 = vmatpush2.bf16.msra.mxu0 0
    %127 = vmatprep.subr.bf16.mxu0 0
    %128 = vmatpush2.bf16.msra.mxu0 0
    %129 = vmatprep.subr.bf16.mxu0 0
    %130 = vmatpush2.bf16.msra.mxu0 0
    %131 = vmatprep.subr.bf16.mxu0 0
    %132 = vmatpush2.bf16.msra.mxu0 0
    %133 = vmatprep.subr.bf16.mxu0 0
    %134 = vmatpush2.bf16.msra.mxu0 0
    %135 = vmatprep.subr.bf16.mxu0 0
    %136 = vmatpush2.bf16.msra.mxu0 0
    %137 = vmatprep.subr.bf16.mxu0 0
    %138 = vmatpush2.bf16.msra.mxu0 0
    %139 = vmatprep.subr.bf16.mxu0 0
    %140 = vmatpush2.bf16.msra.mxu0 0
    %141 = vmatprep.mubr.bf16.mxu0 0
    %142 = vmatmul.mubr.bf16.gmra.mxu0 %v92
    %v143 = vpop.f32.mrf.mxu0
    %v144 = vadd.f32 0.0, %v143
    %v145 = vpop.f32.mrf.mxu0
    %v146 = vpop.f32.mrf.mxu0
    %v147 = vadd.f32 0.0, %v146
    %v148 = vpop.f32.mrf.mxu0
    %149 = vmatprep.mubr.bf16.mxu0 0
    %150 = vmatmul.mubr.bf16.gmra.mxu0 %v95
    %v151 = vpop.f32.mrf.mxu0
    %v152 = vadd.f32 0.0, %v151
    %v153 = vpop.f32.mrf.mxu0
    %v154 = vpop.f32.mrf.mxu0
    %v155 = vadd.f32 0.0, %v154
    %v156 = vpop.f32.mrf.mxu0
    %157 = vmatprep.mubr.bf16.mxu0 0
    %158 = vmatmul.mubr.bf16.gmra.mxu0 %v98
    %v159 = vpop.f32.mrf.mxu0
    %v160 = vadd.f32 0.0, %v159
    %v161 = vpop.f32.mrf.mxu0
    %v162 = vpop.f32.mrf.mxu0
    %v163 = vadd.f32 0.0, %v162
    %v164 = vpop.f32.mrf.mxu0
    %165 = vmatprep.mubr.bf16.mxu0 0
    %166 = vmatmul.mubr.bf16.gmra.mxu0 %v101
    %v167 = vpop.f32.mrf.mxu0
    %v168 = vadd.f32 0.0, %v167
    %v169 = vpop.f32.mrf.mxu0
    %v170 = vpop.f32.mrf.mxu0
    %v171 = vadd.f32 0.0, %v170
    %v172 = vpop.f32.mrf.mxu0
    %173 = vmatprep.mubr.bf16.mxu0 0
    %174 = vmatmul.mubr.bf16.gmra.mxu0 %v104
    %v175 = vpop.f32.mrf.mxu0
    %v176 = vadd.f32 0.0, %v175
    %v177 = vpop.f32.mrf.mxu0
    %v178 = vpop.f32.mrf.mxu0
    %v179 = vadd.f32 0.0, %v178
    %v180 = vpop.f32.mrf.mxu0
    %181 = vmatprep.mubr.bf16.mxu0 0
    %182 = vmatmul.mubr.bf16.gmra.mxu0 %v107
    %v183 = vpop.f32.mrf.mxu0
    %v184 = vadd.f32 0.0, %v183
    %v185 = vpop.f32.mrf.mxu0
    %v186 = vpop.f32.mrf.mxu0
    %v187 = vadd.f32 0.0, %v186
    %v188 = vpop.f32.mrf.mxu0
    %189 = vdwg.mxu0
    %v190 = vld [vmem:[%s1] sm:$0xf]
    %v191 = vld [vmem:[%s1 + $0x4] sm:$0xf]
    %v192 = vld [vmem:[%s1 + $0x8] sm:$0xf]
    %v193 = vld [vmem:[%s1 + $0xc] sm:$0xf]
    %v194 = vld [vmem:[%s1 + $0x10] sm:$0xf]
    %v195 = vld [vmem:[%s1 + $0x14] sm:$0xf]
    %v196 = vld [vmem:[%s1 + $0x18] sm:$0xf]
    %v197 = vld [vmem:[%s1 + $0x1c] sm:$0xf]
    %v198 = vld [vmem:[%s1 + $0x20] sm:$0xf]
    %v199 = vld [vmem:[%s1 + $0x24] sm:$0xf]
    %v200 = vld [vmem:[%s1 + $0x28] sm:$0xf]
    %v201 = vld [vmem:[%s1 + $0x2c] sm:$0xf]
    %v202 = vld [vmem:[%s1 + $0x30] sm:$0xf]
    %v203 = vld [vmem:[%s1 + $0x34] sm:$0xf]
    %v204 = vld [vmem:[%s1 + $0x38] sm:$0xf]
    %v205 = vld [vmem:[%s1 + $0x3c] sm:$0xf]
    %v206 = vld [vmem:[%s1 + $0x40] sm:$0xf]
    %v207 = vld [vmem:[%s1 + $0x44] sm:$0xf]
    %v208 = vld [vmem:[%s1 + $0x48] sm:$0xf]
    %v209 = vld [vmem:[%s1 + $0x4c] sm:$0xf]
    %v210 = vld [vmem:[%s1 + $0x50] sm:$0xf]
    %v211 = vld [vmem:[%s1 + $0x54] sm:$0xf]
    %v212 = vld [vmem:[%s1 + $0x58] sm:$0xf]
    %v213 = vld [vmem:[%s1 + $0x5c] sm:$0xf]
    %v214 = vld [vmem:[%s1 + $0x60] sm:$0xf]
    %v215 = vld [vmem:[%s1 + $0x64] sm:$0xf]
    %v216 = vld [vmem:[%s1 + $0x68] sm:$0xf]
    %v217 = vld [vmem:[%s1 + $0x6c] sm:$0xf]
    %v218 = vld [vmem:[%s1 + $0x70] sm:$0xf]
    %v219 = vld [vmem:[%s1 + $0x74] sm:$0xf]
    %v220 = vld [vmem:[%s1 + $0x78] sm:$0xf]
    %v221 = vld [vmem:[%s1 + $0x7c] sm:$0xf]
    %v222 = vld [vmem:[%s1 + $0x80] sm:$0xf]
    %v223 = vld [vmem:[%s1 + $0x84] sm:$0xf]
    %v224 = vld [vmem:[%s1 + $0x88] sm:$0xf]
    %v225 = vld [vmem:[%s1 + $0x8c] sm:$0xf]
    %v226 = vld [vmem:[%s1 + $0x90] sm:$0xf]
    %v227 = vld [vmem:[%s1 + $0x94] sm:$0xf]
    %v228 = vld [vmem:[%s1 + $0x98] sm:$0xf]
    %v229 = vld [vmem:[%s1 + $0x9c] sm:$0xf]
    %v230 = vld [vmem:[%s1 + $0xa0] sm:$0xf]
    %v231 = vld [vmem:[%s1 + $0xa4] sm:$0xf]
    %v232 = vld [vmem:[%s1 + $0xa8] sm:$0xf]
    %v233 = vld [vmem:[%s1 + $0xac] sm:$0xf]
    %v234 = vld [vmem:[%s1 + $0xb0] sm:$0xf]
    %v235 = vld [vmem:[%s1 + $0xb4] sm:$0xf]
    %v236 = vld [vmem:[%s1 + $0xb8] sm:$0xf]
    %v237 = vld [vmem:[%s1 + $0xbc] sm:$0xf]
    %v238 = vpack.c.bf16 %v147, %v144
    %v239 = vpack.c.bf16 %v163, %v160
    %v240 = vpack.c.bf16 %v179, %v176
    %v241 = vpack.c.bf16 %v155, %v152
    %v242 = vpack.c.bf16 %v171, %v168
    %v243 = vpack.c.bf16 %v187, %v184
    %v244 = vld [vmem:[%s3] ss:$0 sm:$0xff]
    %v293 = vunpack.c.l.b16 %v190
    %v294 = vunpack.c.l.b16 %v191
    %v295 = vunpack.c.l.b16 %v192
    %v296 = vunpack.c.l.b16 %v193
    %v297 = vunpack.c.l.b16 %v194
    %v298 = vunpack.c.l.b16 %v195
    %v299 = vunpack.c.l.b16 %v196
    %v300 = vunpack.c.l.b16 %v197
    %v301 = vunpack.c.l.b16 %v198
    %v302 = vunpack.c.l.b16 %v199
    %v303 = vunpack.c.l.b16 %v200
    %v304 = vunpack.c.l.b16 %v201
    %v305 = vunpack.c.l.b16 %v202
    %v306 = vunpack.c.l.b16 %v203
    %v307 = vunpack.c.l.b16 %v204
    %v308 = vunpack.c.l.b16 %v205
    %v309 = vunpack.c.l.b16 %v206
    %v310 = vunpack.c.l.b16 %v207
    %v311 = vunpack.c.l.b16 %v208
    %v312 = vunpack.c.l.b16 %v209
    %v313 = vunpack.c.l.b16 %v210
    %v314 = vunpack.c.l.b16 %v211
    %v315 = vunpack.c.l.b16 %v212
    %v316 = vunpack.c.l.b16 %v213
    %v317 = vunpack.c.l.b16 %v214
    %v318 = vunpack.c.l.b16 %v215
    %v319 = vunpack.c.l.b16 %v216
    %v320 = vunpack.c.l.b16 %v217
    %v321 = vunpack.c.l.b16 %v218
    %v322 = vunpack.c.l.b16 %v219
    %v323 = vunpack.c.l.b16 %v220
    %v324 = vunpack.c.l.b16 %v221
    %v325 = vunpack.c.l.b16 %v222
    %v326 = vunpack.c.l.b16 %v223
    %v327 = vunpack.c.l.b16 %v224
    %v328 = vunpack.c.l.b16 %v225
    %v329 = vunpack.c.l.b16 %v226
    %v330 = vunpack.c.l.b16 %v227
    %v331 = vunpack.c.l.b16 %v228
    %v332 = vunpack.c.l.b16 %v229
    %v333 = vunpack.c.l.b16 %v230
    %v334 = vunpack.c.l.b16 %v231
    %v335 = vunpack.c.l.b16 %v232
    %v336 = vunpack.c.l.b16 %v233
    %v337 = vunpack.c.l.b16 %v234
    %v338 = vunpack.c.l.b16 %v235
    %v339 = vunpack.c.l.b16 %v236
    %v340 = vunpack.c.l.b16 %v237
    %v341 = vpack.c.b16 %v294, %v293
    %v342 = vpack.c.b16 %v296, %v295
    %v343 = vpack.c.b16 %v298, %v297
    %v344 = vpack.c.b16 %v300, %v299
    %v345 = vpack.c.b16 %v302, %v301
    %v346 = vpack.c.b16 %v304, %v303
    %v347 = vpack.c.b16 %v306, %v305
    %v348 = vpack.c.b16 %v308, %v307
    %v349 = vpack.c.b16 %v310, %v309
    %v350 = vpack.c.b16 %v312, %v311
    %v351 = vpack.c.b16 %v314, %v313
    %v352 = vpack.c.b16 %v316, %v315
    %v353 = vpack.c.b16 %v318, %v317
    %v354 = vpack.c.b16 %v320, %v319
    %v355 = vpack.c.b16 %v322, %v321
    %v356 = vpack.c.b16 %v324, %v323
    %v357 = vpack.c.b16 %v326, %v325
    %v358 = vpack.c.b16 %v328, %v327
    %v359 = vpack.c.b16 %v330, %v329
    %v360 = vpack.c.b16 %v332, %v331
    %v361 = vpack.c.b16 %v334, %v333
    %v362 = vpack.c.b16 %v336, %v335
    %v363 = vpack.c.b16 %v338, %v337
    %v364 = vpack.c.b16 %v340, %v339
    %389 = vmatprep.subr.bf16.mxu0 0
    %390 = vmatpush1.bf16.msra.mxu0 %v348
    %391 = vmatprep.subr.bf16.mxu0 0
    %392 = vmatpush1.bf16.msra.mxu0 %v347
    %393 = vmatprep.subr.bf16.mxu0 0
    %394 = vmatpush1.bf16.msra.mxu0 %v346
    %395 = vmatprep.subr.bf16.mxu0 0
    %396 = vmatpush1.bf16.msra.mxu0 %v345
    %397 = vmatprep.subr.bf16.mxu0 0
    %398 = vmatpush1.bf16.msra.mxu0 %v344
    %399 = vmatprep.subr.bf16.mxu0 0
    %400 = vmatpush1.bf16.msra.mxu0 %v343
    %401 = vmatprep.subr.bf16.mxu0 0
    %402 = vmatpush1.bf16.msra.mxu0 %v342
    %403 = vmatprep.subr.bf16.mxu0 0
    %404 = vmatpush1.bf16.msra.mxu0 %v341
    %405 = vmatprep.subr.bf16.mxu0 0
    %406 = vmatpush2.bf16.msra.mxu0 %v356
    %407 = vmatprep.subr.bf16.mxu0 0
    %408 = vmatpush2.bf16.msra.mxu0 %v355
    %409 = vmatprep.subr.bf16.mxu0 0
    %410 = vmatpush2.bf16.msra.mxu0 %v354
    %411 = vmatprep.subr.bf16.mxu0 0
    %412 = vmatpush2.bf16.msra.mxu0 %v353
    %413 = vmatprep.subr.bf16.mxu0 0
    %414 = vmatpush2.bf16.msra.mxu0 %v352
    %415 = vmatprep.subr.bf16.mxu0 0
    %416 = vmatpush2.bf16.msra.mxu0 %v351
    %417 = vmatprep.subr.bf16.mxu0 0
    %418 = vmatpush2.bf16.msra.mxu0 %v350
    %419 = vmatprep.subr.bf16.mxu0 0
    %420 = vmatpush2.bf16.msra.mxu0 %v349
    %421 = vmatprep.mubr.bf16.mxu0 %v239
    %422 = vmatmul.mubr.bf16.gmra.mxu0 %v238
    %v423 = vpop.f32.mrf.mxu0
    %v424 = vadd.f32 %v244, %v423
    %v425 = vpop.f32.mrf.mxu0
    %v426 = vpop.f32.mrf.mxu0
    %v427 = vadd.f32 %v244, %v426
    %v428 = vpop.f32.mrf.mxu0
    %429 = vmatprep.mubr.bf16.mxu0 %v242
    %430 = vmatmul.mubr.bf16.gmra.mxu0 %v241
    %v431 = vpop.f32.mrf.mxu0
    %v432 = vadd.f32 %v244, %v431
    %v433 = vpop.f32.mrf.mxu0
    %v434 = vpop.f32.mrf.mxu0
    %v435 = vadd.f32 %v244, %v434
    %v436 = vpop.f32.mrf.mxu0
    %437 = vdwg.mxu0
    %438 = vmatprep.subr.bf16.mxu0 0
    %439 = vmatpush1.bf16.msra.mxu0 %v364
    %440 = vmatprep.subr.bf16.mxu0 0
    %441 = vmatpush1.bf16.msra.mxu0 %v363
    %442 = vmatprep.subr.bf16.mxu0 0
    %443 = vmatpush1.bf16.msra.mxu0 %v362
    %444 = vmatprep.subr.bf16.mxu0 0
    %445 = vmatpush1.bf16.msra.mxu0 %v361
    %446 = vmatprep.subr.bf16.mxu0 0
    %447 = vmatpush1.bf16.msra.mxu0 %v360
    %448 = vmatprep.subr.bf16.mxu0 0
    %449 = vmatpush1.bf16.msra.mxu0 %v359
    %450 = vmatprep.subr.bf16.mxu0 0
    %451 = vmatpush1.bf16.msra.mxu0 %v358
    %452 = vmatprep.subr.bf16.mxu0 0
    %453 = vmatpush1.bf16.msra.mxu0 %v357
    %454 = vmatprep.subr.bf16.mxu0 0
    %455 = vmatpush2.bf16.msra.mxu0 0
    %456 = vmatprep.subr.bf16.mxu0 0
    %457 = vmatpush2.bf16.msra.mxu0 0
    %458 = vmatprep.subr.bf16.mxu0 0
    %459 = vmatpush2.bf16.msra.mxu0 0
    %460 = vmatprep.subr.bf16.mxu0 0
    %461 = vmatpush2.bf16.msra.mxu0 0
    %462 = vmatprep.subr.bf16.mxu0 0
    %463 = vmatpush2.bf16.msra.mxu0 0
    %464 = vmatprep.subr.bf16.mxu0 0
    %465 = vmatpush2.bf16.msra.mxu0 0
    %466 = vmatprep.subr.bf16.mxu0 0
    %467 = vmatpush2.bf16.msra.mxu0 0
    %468 = vmatprep.subr.bf16.mxu0 0
    %469 = vmatpush2.bf16.msra.mxu0 0
    %470 = vmatprep.mubr.bf16.mxu0 0
    %471 = vmatmul.mubr.bf16.gmra.mxu0 %v240
    %v472 = vpop.f32.mrf.mxu0
    %v473 = vadd.f32 %v424, %v472
    %v474 = vpop.f32.mrf.mxu0
    %v475 = vpop.f32.mrf.mxu0
    %v476 = vadd.f32 %v427, %v475
    %v477 = vpop.f32.mrf.mxu0
    %478 = vmatprep.mubr.bf16.mxu0 0
    %479 = vmatmul.mubr.bf16.gmra.mxu0 %v243
    %v480 = vpop.f32.mrf.mxu0
    %v481 = vadd.f32 %v432, %v480
    %v482 = vpop.f32.mrf.mxu0
    %v483 = vpop.f32.mrf.mxu0
    %v484 = vadd.f32 %v435, %v483
    %v485 = vpop.f32.mrf.mxu0
    %486 = vdwg.mxu0
    %vm487 = vcmp.ge.f32.partialorder %v473, 0.0
    %vm488 = vcmp.ge.f32.partialorder %v476, 0.0
    %vm489 = vcmp.ge.f32.partialorder %v481, 0.0
    %vm490 = vcmp.ge.f32.partialorder %v484, 0.0
    %v491 = vmul.f32 %v473, 0.1
    %v492 = vmul.f32 %v476, 0.1
    %v493 = vmul.f32 %v481, 0.1
    %v494 = vmul.f32 %v484, 0.1
    %v495 = vsel %vm487, %v473, %v491
    %v496 = vsel %vm488, %v476, %v492
    %v497 = vsel %vm489, %v481, %v493
    %v498 = vsel %vm490, %v484, %v494
    %v499 = vld [vmem:[%s1 + $0x2b0] sm:$0xf]
    %v500 = vld [vmem:[%s1 + $0x2b4] sm:$0xf]
    %v501 = vld [vmem:[%s1 + $0x2b8] sm:$0xf]
    %v502 = vld [vmem:[%s1 + $0x2bc] sm:$0xf]
    %v503 = vld [vmem:[%s1 + $0x2c0] sm:$0xf]
    %v504 = vld [vmem:[%s1 + $0x2c4] sm:$0xf]
    %v505 = vpack.c.bf16 %v496, %v495
    %v506 = vpack.c.bf16 %v498, %v497
    %v513 = vunpack.c.l.b16 %v499
    %v514 = vunpack.c.l.b16 %v500
    %v515 = vunpack.c.l.b16 %v501
    %v516 = vunpack.c.l.b16 %v502
    %v517 = vunpack.c.l.b16 %v503
    %v518 = vunpack.c.l.b16 %v504
    %v519 = vpack.c.b16 %v514, %v513
    %v520 = vpack.c.b16 %v516, %v515
    %v521 = vpack.c.b16 %v518, %v517
    %v523 = vsel %vm90, %v519, 0
    %v526 = vsel %vm90, %v520, 0
    %v529 = vsel %vm90, %v521, 0
    %531 = vmatprep.subr.bf16.mxu0 0
    %532 = vmatpush1.bf16.msra.mxu0 0
    %533 = vmatprep.subr.bf16.mxu0 0
    %534 = vmatpush1.bf16.msra.mxu0 0
    %535 = vmatprep.subr.bf16.mxu0 0
    %536 = vmatpush1.bf16.msra.mxu0 0
    %537 = vmatprep.subr.bf16.mxu0 0
    %538 = vmatpush1.bf16.msra.mxu0 0
    %539 = vmatprep.subr.bf16.mxu0 0
    %540 = vmatpush1.bf16.msra.mxu0 0
    %541 = vmatprep.subr.bf16.mxu0 0
    %542 = vmatpush1.bf16.msra.mxu0 0
    %543 = vmatprep.subr.bf16.mxu0 0
    %544 = vmatpush1.bf16.msra.mxu0 %v506
    %545 = vmatprep.subr.bf16.mxu0 0
    %546 = vmatpush1.bf16.msra.mxu0 %v505
    %547 = vmatprep.subr.bf16.mxu0 0
    %548 = vmatpush2.bf16.msra.mxu0 0
    %549 = vmatprep.subr.bf16.mxu0 0
    %550 = vmatpush2.bf16.msra.mxu0 0
    %551 = vmatprep.subr.bf16.mxu0 0
    %552 = vmatpush2.bf16.msra.mxu0 0
    %553 = vmatprep.subr.bf16.mxu0 0
    %554 = vmatpush2.bf16.msra.mxu0 0
    %555 = vmatprep.subr.bf16.mxu0 0
    %556 = vmatpush2.bf16.msra.mxu0 0
    %557 = vmatprep.subr.bf16.mxu0 0
    %558 = vmatpush2.bf16.msra.mxu0 0
    %559 = vmatprep.subr.bf16.mxu0 0
    %560 = vmatpush2.bf16.msra.mxu0 0
    %561 = vmatprep.subr.bf16.mxu0 0
    %562 = vmatpush2.bf16.msra.mxu0 0
    %563 = vmatprep.mubr.bf16.mxu0 0
    %564 = vmatmul.mubr.bf16.gmra.mxu0 %v523
    %v565 = vpop.f32.mrf.mxu0
    %v566 = vadd.f32 0.0, %v565
    %v567 = vpop.f32.mrf.mxu0
    %v568 = vpop.f32.mrf.mxu0
    %v569 = vadd.f32 0.0, %v568
    %v570 = vpop.f32.mrf.mxu0
    %571 = vmatprep.mubr.bf16.mxu0 0
    %572 = vmatmul.mubr.bf16.gmra.mxu0 %v526
    %v573 = vpop.f32.mrf.mxu0
    %v574 = vadd.f32 0.0, %v573
    %v575 = vpop.f32.mrf.mxu0
    %v576 = vpop.f32.mrf.mxu0
    %v577 = vadd.f32 0.0, %v576
    %v578 = vpop.f32.mrf.mxu0
    %579 = vmatprep.mubr.bf16.mxu0 0
    %580 = vmatmul.mubr.bf16.gmra.mxu0 %v529
    %v581 = vpop.f32.mrf.mxu0
    %v582 = vadd.f32 0.0, %v581
    %v583 = vpop.f32.mrf.mxu0
    %v584 = vpop.f32.mrf.mxu0
    %v585 = vadd.f32 0.0, %v584
    %v586 = vpop.f32.mrf.mxu0
    %587 = vdwg.mxu0
    %v588 = vld [vmem:[%s1 + $0xc0] sm:$0xf]
    %v589 = vld [vmem:[%s1 + $0xc4] sm:$0xf]
    %v590 = vld [vmem:[%s1 + $0xc8] sm:$0xf]
    %v591 = vld [vmem:[%s1 + $0xcc] sm:$0xf]
    %v592 = vld [vmem:[%s1 + $0xd0] sm:$0xf]
    %v593 = vld [vmem:[%s1 + $0xd4] sm:$0xf]
    %v594 = vld [vmem:[%s1 + $0xd8] sm:$0xf]
    %v595 = vld [vmem:[%s1 + $0xdc] sm:$0xf]
    %v596 = vld [vmem:[%s1 + $0xe0] sm:$0xf]
    %v597 = vld [vmem:[%s1 + $0xe4] sm:$0xf]
    %v598 = vld [vmem:[%s1 + $0xe8] sm:$0xf]
    %v599 = vld [vmem:[%s1 + $0xec] sm:$0xf]
    %v600 = vld [vmem:[%s1 + $0xf0] sm:$0xf]
    %v601 = vld [vmem:[%s1 + $0xf4] sm:$0xf]
    %v602 = vld [vmem:[%s1 + $0xf8] sm:$0xf]
    %v603 = vld [vmem:[%s1 + $0xfc] sm:$0xf]
    %v604 = vld [vmem:[%s1 + $0x100] sm:$0xf]
    %v605 = vld [vmem:[%s1 + $0x104] sm:$0xf]
    %v606 = vld [vmem:[%s1 + $0x108] sm:$0xf]
    %v607 = vld [vmem:[%s1 + $0x10c] sm:$0xf]
    %v608 = vld [vmem:[%s1 + $0x110] sm:$0xf]
    %v609 = vld [vmem:[%s1 + $0x114] sm:$0xf]
    %v610 = vld [vmem:[%s1 + $0x118] sm:$0xf]
    %v611 = vld [vmem:[%s1 + $0x11c] sm:$0xf]
    %v612 = vld [vmem:[%s1 + $0x120] sm:$0xf]
    %v613 = vld [vmem:[%s1 + $0x124] sm:$0xf]
    %v614 = vld [vmem:[%s1 + $0x128] sm:$0xf]
    %v615 = vld [vmem:[%s1 + $0x12c] sm:$0xf]
    %v616 = vld [vmem:[%s1 + $0x130] sm:$0xf]
    %v617 = vld [vmem:[%s1 + $0x134] sm:$0xf]
    %v618 = vld [vmem:[%s1 + $0x138] sm:$0xf]
    %v619 = vld [vmem:[%s1 + $0x13c] sm:$0xf]
    %v620 = vld [vmem:[%s1 + $0x140] sm:$0xf]
    %v621 = vld [vmem:[%s1 + $0x144] sm:$0xf]
    %v622 = vld [vmem:[%s1 + $0x148] sm:$0xf]
    %v623 = vld [vmem:[%s1 + $0x14c] sm:$0xf]
    %v624 = vld [vmem:[%s1 + $0x150] sm:$0xf]
    %v625 = vld [vmem:[%s1 + $0x154] sm:$0xf]
    %v626 = vld [vmem:[%s1 + $0x158] sm:$0xf]
    %v627 = vld [vmem:[%s1 + $0x15c] sm:$0xf]
    %v628 = vld [vmem:[%s1 + $0x160] sm:$0xf]
    %v629 = vld [vmem:[%s1 + $0x164] sm:$0xf]
    %v630 = vld [vmem:[%s1 + $0x168] sm:$0xf]
    %v631 = vld [vmem:[%s1 + $0x16c] sm:$0xf]
    %v632 = vld [vmem:[%s1 + $0x170] sm:$0xf]
    %v633 = vld [vmem:[%s1 + $0x174] sm:$0xf]
    %v634 = vld [vmem:[%s1 + $0x178] sm:$0xf]
    %v635 = vld [vmem:[%s1 + $0x17c] sm:$0xf]
    %v636 = vpack.c.bf16 %v569, %v566
    %v637 = vpack.c.bf16 %v577, %v574
    %v638 = vpack.c.bf16 %v585, %v582
    %v639 = vld [vmem:[%s3 + $0x1] ss:$0 sm:$0xff]
    %v688 = vunpack.c.l.b16 %v588
    %v689 = vunpack.c.l.b16 %v589
    %v690 = vunpack.c.l.b16 %v590
    %v691 = vunpack.c.l.b16 %v591
    %v692 = vunpack.c.l.b16 %v592
    %v693 = vunpack.c.l.b16 %v593
    %v694 = vunpack.c.l.b16 %v594
    %v695 = vunpack.c.l.b16 %v595
    %v696 = vunpack.c.l.b16 %v596
    %v697 = vunpack.c.l.b16 %v597
    %v698 = vunpack.c.l.b16 %v598
    %v699 = vunpack.c.l.b16 %v599
    %v700 = vunpack.c.l.b16 %v600
    %v701 = vunpack.c.l.b16 %v601
    %v702 = vunpack.c.l.b16 %v602
    %v703 = vunpack.c.l.b16 %v603
    %v704 = vunpack.c.l.b16 %v604
    %v705 = vunpack.c.l.b16 %v605
    %v706 = vunpack.c.l.b16 %v606
    %v707 = vunpack.c.l.b16 %v607
    %v708 = vunpack.c.l.b16 %v608
    %v709 = vunpack.c.l.b16 %v609
    %v710 = vunpack.c.l.b16 %v610
    %v711 = vunpack.c.l.b16 %v611
    %v712 = vunpack.c.l.b16 %v612
    %v713 = vunpack.c.l.b16 %v613
    %v714 = vunpack.c.l.b16 %v614
    %v715 = vunpack.c.l.b16 %v615
    %v716 = vunpack.c.l.b16 %v616
    %v717 = vunpack.c.l.b16 %v617
    %v718 = vunpack.c.l.b16 %v618
    %v719 = vunpack.c.l.b16 %v619
    %v720 = vunpack.c.l.b16 %v620
    %v721 = vunpack.c.l.b16 %v621
    %v722 = vunpack.c.l.b16 %v622
    %v723 = vunpack.c.l.b16 %v623
    %v724 = vunpack.c.l.b16 %v624
    %v725 = vunpack.c.l.b16 %v625
    %v726 = vunpack.c.l.b16 %v626
    %v727 = vunpack.c.l.b16 %v627
    %v728 = vunpack.c.l.b16 %v628
    %v729 = vunpack.c.l.b16 %v629
    %v730 = vunpack.c.l.b16 %v630
    %v731 = vunpack.c.l.b16 %v631
    %v732 = vunpack.c.l.b16 %v632
    %v733 = vunpack.c.l.b16 %v633
    %v734 = vunpack.c.l.b16 %v634
    %v735 = vunpack.c.l.b16 %v635
    %v736 = vpack.c.b16 %v689, %v688
    %v737 = vpack.c.b16 %v691, %v690
    %v738 = vpack.c.b16 %v693, %v692
    %v739 = vpack.c.b16 %v695, %v694
    %v740 = vpack.c.b16 %v697, %v696
    %v741 = vpack.c.b16 %v699, %v698
    %v742 = vpack.c.b16 %v701, %v700
    %v743 = vpack.c.b16 %v703, %v702
    %v744 = vpack.c.b16 %v705, %v704
    %v745 = vpack.c.b16 %v707, %v706
    %v746 = vpack.c.b16 %v709, %v708
    %v747 = vpack.c.b16 %v711, %v710
    %v748 = vpack.c.b16 %v713, %v712
    %v749 = vpack.c.b16 %v715, %v714
    %v750 = vpack.c.b16 %v717, %v716
    %v751 = vpack.c.b16 %v719, %v718
    %v752 = vpack.c.b16 %v721, %v720
    %v753 = vpack.c.b16 %v723, %v722
    %v754 = vpack.c.b16 %v725, %v724
    %v755 = vpack.c.b16 %v727, %v726
    %v756 = vpack.c.b16 %v729, %v728
    %v757 = vpack.c.b16 %v731, %v730
    %v758 = vpack.c.b16 %v733, %v732
    %v759 = vpack.c.b16 %v735, %v734
    %784 = vmatprep.subr.bf16.mxu0 0
    %785 = vmatpush1.bf16.msra.mxu0 %v743
    %786 = vmatprep.subr.bf16.mxu0 0
    %787 = vmatpush1.bf16.msra.mxu0 %v742
    %788 = vmatprep.subr.bf16.mxu0 0
    %789 = vmatpush1.bf16.msra.mxu0 %v741
    %790 = vmatprep.subr.bf16.mxu0 0
    %791 = vmatpush1.bf16.msra.mxu0 %v740
    %792 = vmatprep.subr.bf16.mxu0 0
    %793 = vmatpush1.bf16.msra.mxu0 %v739
    %794 = vmatprep.subr.bf16.mxu0 0
    %795 = vmatpush1.bf16.msra.mxu0 %v738
    %796 = vmatprep.subr.bf16.mxu0 0
    %797 = vmatpush1.bf16.msra.mxu0 %v737
    %798 = vmatprep.subr.bf16.mxu0 0
    %799 = vmatpush1.bf16.msra.mxu0 %v736
    %800 = vmatprep.subr.bf16.mxu0 0
    %801 = vmatpush2.bf16.msra.mxu0 %v751
    %802 = vmatprep.subr.bf16.mxu0 0
    %803 = vmatpush2.bf16.msra.mxu0 %v750
    %804 = vmatprep.subr.bf16.mxu0 0
    %805 = vmatpush2.bf16.msra.mxu0 %v749
    %806 = vmatprep.subr.bf16.mxu0 0
    %807 = vmatpush2.bf16.msra.mxu0 %v748
    %808 = vmatprep.subr.bf16.mxu0 0
    %809 = vmatpush2.bf16.msra.mxu0 %v747
    %810 = vmatprep.subr.bf16.mxu0 0
    %811 = vmatpush2.bf16.msra.mxu0 %v746
    %812 = vmatprep.subr.bf16.mxu0 0
    %813 = vmatpush2.bf16.msra.mxu0 %v745
    %814 = vmatprep.subr.bf16.mxu0 0
    %815 = vmatpush2.bf16.msra.mxu0 %v744
    %816 = vmatprep.mubr.bf16.mxu0 %v637
    %817 = vmatmul.mubr.bf16.gmra.mxu0 %v636
    %v818 = vpop.f32.mrf.mxu0
    %v819 = vadd.f32 %v639, %v818
    %v820 = vpop.f32.mrf.mxu0
    %v821 = vpop.f32.mrf.mxu0
    %v822 = vadd.f32 %v639, %v821
    %v823 = vpop.f32.mrf.mxu0
    %824 = vdwg.mxu0
    %825 = vmatprep.subr.bf16.mxu0 0
    %826 = vmatpush1.bf16.msra.mxu0 %v759
    %827 = vmatprep.subr.bf16.mxu0 0
    %828 = vmatpush1.bf16.msra.mxu0 %v758
    %829 = vmatprep.subr.bf16.mxu0 0
    %830 = vmatpush1.bf16.msra.mxu0 %v757
    %831 = vmatprep.subr.bf16.mxu0 0
    %832 = vmatpush1.bf16.msra.mxu0 %v756
    %833 = vmatprep.subr.bf16.mxu0 0
    %834 = vmatpush1.bf16.msra.mxu0 %v755
    %835 = vmatprep.subr.bf16.mxu0 0
    %836 = vmatpush1.bf16.msra.mxu0 %v754
    %837 = vmatprep.subr.bf16.mxu0 0
    %838 = vmatpush1.bf16.msra.mxu0 %v753
    %839 = vmatprep.subr.bf16.mxu0 0
    %840 = vmatpush1.bf16.msra.mxu0 %v752
    %841 = vmatprep.subr.bf16.mxu0 0
    %842 = vmatpush2.bf16.msra.mxu0 0
    %843 = vmatprep.subr.bf16.mxu0 0
    %844 = vmatpush2.bf16.msra.mxu0 0
    %845 = vmatprep.subr.bf16.mxu0 0
    %846 = vmatpush2.bf16.msra.mxu0 0
    %847 = vmatprep.subr.bf16.mxu0 0
    %848 = vmatpush2.bf16.msra.mxu0 0
    %849 = vmatprep.subr.bf16.mxu0 0
    %850 = vmatpush2.bf16.msra.mxu0 0
    %851 = vmatprep.subr.bf16.mxu0 0
    %852 = vmatpush2.bf16.msra.mxu0 0
    %853 = vmatprep.subr.bf16.mxu0 0
    %854 = vmatpush2.bf16.msra.mxu0 0
    %855 = vmatprep.subr.bf16.mxu0 0
    %856 = vmatpush2.bf16.msra.mxu0 0
    %857 = vmatprep.mubr.bf16.mxu0 0
    %858 = vmatmul.mubr.bf16.gmra.mxu0 %v638
    %v859 = vpop.f32.mrf.mxu0
    %v860 = vadd.f32 %v819, %v859
    %v861 = vpop.f32.mrf.mxu0
    %v862 = vpop.f32.mrf.mxu0
    %v863 = vadd.f32 %v822, %v862
    %v864 = vpop.f32.mrf.mxu0
    %865 = vdwg.mxu0
    %vm866 = vcmp.ge.f32.partialorder %v860, 0.0
    %vm867 = vcmp.ge.f32.partialorder %v863, 0.0
    %v868 = vmul.f32 %v860, 0.1
    %v869 = vmul.f32 %v863, 0.1
    %v870 = vsel %vm866, %v860, %v868
    %v871 = vsel %vm867, %v863, %v869
    %v872 = vld [vmem:[%s1 + $0x240] sm:$0xf]
    %v873 = vld [vmem:[%s1 + $0x244] sm:$0xf]
    %v874 = vld [vmem:[%s1 + $0x248] sm:$0xf]
    %v875 = vld [vmem:[%s1 + $0x24c] sm:$0xf]
    %v876 = vld [vmem:[%s1 + $0x250] sm:$0xf]
    %v877 = vld [vmem:[%s1 + $0x254] sm:$0xf]
    %v878 = vld [vmem:[%s1 + $0x258] sm:$0xf]
    %v879 = vld [vmem:[%s1 + $0x25c] sm:$0xf]
    %v880 = vld [vmem:[%s1 + $0x260] sm:$0xf]
    %v881 = vld [vmem:[%s1 + $0x264] sm:$0xf]
    %v882 = vld [vmem:[%s1 + $0x268] sm:$0xf]
    %v883 = vld [vmem:[%s1 + $0x26c] sm:$0xf]
    %v884 = vld [vmem:[%s1 + $0x270] sm:$0xf]
    %v885 = vld [vmem:[%s1 + $0x274] sm:$0xf]
    %v886 = vld [vmem:[%s1 + $0x278] sm:$0xf]
    %v887 = vld [vmem:[%s1 + $0x27c] sm:$0xf]
    %v888 = vpack.c.bf16 %v871, %v870
    %v889 = vld [vmem:[%s3 + $0x2] ss:$0 sm:$0xff]
    %v906 = vunpack.c.l.b16 %v872
    %v907 = vunpack.c.l.b16 %v873
    %v908 = vunpack.c.l.b16 %v874
    %v909 = vunpack.c.l.b16 %v875
    %v910 = vunpack.c.l.b16 %v876
    %v911 = vunpack.c.l.b16 %v877
    %v912 = vunpack.c.l.b16 %v878
    %v913 = vunpack.c.l.b16 %v879
    %v914 = vunpack.c.l.b16 %v880
    %v915 = vunpack.c.l.b16 %v881
    %v916 = vunpack.c.l.b16 %v882
    %v917 = vunpack.c.l.b16 %v883
    %v918 = vunpack.c.l.b16 %v884
    %v919 = vunpack.c.l.b16 %v885
    %v920 = vunpack.c.l.b16 %v886
    %v921 = vunpack.c.l.b16 %v887
    %v922 = vpack.c.b16 %v907, %v906
    %v923 = vpack.c.b16 %v909, %v908
    %v924 = vpack.c.b16 %v911, %v910
    %v925 = vpack.c.b16 %v913, %v912
    %v926 = vpack.c.b16 %v915, %v914
    %v927 = vpack.c.b16 %v917, %v916
    %v928 = vpack.c.b16 %v919, %v918
    %v929 = vpack.c.b16 %v921, %v920
    %938 = vmatprep.subr.bf16.mxu0 0
    %939 = vmatpush1.bf16.msra.mxu0 %v929
    %940 = vmatprep.subr.bf16.mxu0 0
    %941 = vmatpush1.bf16.msra.mxu0 %v928
    %942 = vmatprep.subr.bf16.mxu0 0
    %943 = vmatpush1.bf16.msra.mxu0 %v927
    %944 = vmatprep.subr.bf16.mxu0 0
    %945 = vmatpush1.bf16.msra.mxu0 %v926
    %946 = vmatprep.subr.bf16.mxu0 0
    %947 = vmatpush1.bf16.msra.mxu0 %v925
    %948 = vmatprep.subr.bf16.mxu0 0
    %949 = vmatpush1.bf16.msra.mxu0 %v924
    %950 = vmatprep.subr.bf16.mxu0 0
    %951 = vmatpush1.bf16.msra.mxu0 %v923
    %952 = vmatprep.subr.bf16.mxu0 0
    %953 = vmatpush1.bf16.msra.mxu0 %v922
    %954 = vmatprep.subr.bf16.mxu0 0
    %955 = vmatpush2.bf16.msra.mxu0 0
    %956 = vmatprep.subr.bf16.mxu0 0
    %957 = vmatpush2.bf16.msra.mxu0 0
    %958 = vmatprep.subr.bf16.mxu0 0
    %959 = vmatpush2.bf16.msra.mxu0 0
    %960 = vmatprep.subr.bf16.mxu0 0
    %961 = vmatpush2.bf16.msra.mxu0 0
    %962 = vmatprep.subr.bf16.mxu0 0
    %963 = vmatpush2.bf16.msra.mxu0 0
    %964 = vmatprep.subr.bf16.mxu0 0
    %965 = vmatpush2.bf16.msra.mxu0 0
    %966 = vmatprep.subr.bf16.mxu0 0
    %967 = vmatpush2.bf16.msra.mxu0 0
    %968 = vmatprep.subr.bf16.mxu0 0
    %969 = vmatpush2.bf16.msra.mxu0 0
    %970 = vmatprep.mubr.bf16.mxu0 0
    %971 = vmatmul.mubr.bf16.gmra.mxu0 %v888
    %v972 = vpop.f32.mrf.mxu0
    %v973 = vadd.f32 %v889, %v972
    %v974 = vpop.f32.mrf.mxu0
    %v975 = vpop.f32.mrf.mxu0
    %v976 = vadd.f32 %v889, %v975
    %v977 = vpop.f32.mrf.mxu0
    %978 = vdwg.mxu0
    %vm979 = vcmp.ge.f32.partialorder %v973, 0.0
    %vm980 = vcmp.ge.f32.partialorder %v976, 0.0
    %v981 = vmul.f32 %v973, 0.1
    %v982 = vmul.f32 %v976, 0.1
    %v983 = vsel %vm979, %v973, %v981
    %v984 = vsel %vm980, %v976, %v982
    %v985 = vadd.f32 %v983, %v870
    %v986 = vadd.f32 %v984, %v871
    %v987 = vld [vmem:[%s1 + $0x2c8] sm:$0xf]
    %v988 = vld [vmem:[%s1 + $0x2cc] sm:$0xf]
    %v989 = vld [vmem:[%s1 + $0x2d0] sm:$0xf]
    %v990 = vld [vmem:[%s1 + $0x2d4] sm:$0xf]
    %v991 = vld [vmem:[%s1 + $0x2d8] sm:$0xf]
    %v992 = vld [vmem:[%s1 + $0x2dc] sm:$0xf]
    %v993 = vpack.c.bf16 %v986, %v985
    %v1000 = vunpack.c.l.b16 %v987
    %v1001 = vunpack.c.l.b16 %v988
    %v1002 = vunpack.c.l.b16 %v989
    %v1003 = vunpack.c.l.b16 %v990
    %v1004 = vunpack.c.l.b16 %v991
    %v1005 = vunpack.c.l.b16 %v992
    %v1006 = vpack.c.b16 %v1001, %v1000
    %v1007 = vpack.c.b16 %v1003, %v1002
    %v1008 = vpack.c.b16 %v1005, %v1004
    %vm1009 = vcmask 130048
    %v1011 = vsel %vm1009, %v1006, 0
    %v1014 = vsel %vm1009, %v1007, 0
    %v1017 = vsel %vm1009, %v1008, 0
    %1019 = vmatprep.subr.bf16.mxu0 0
    %1020 = vmatpush1.bf16.msra.mxu0 0
    %1021 = vmatprep.subr.bf16.mxu0 0
    %1022 = vmatpush1.bf16.msra.mxu0 0
    %1023 = vmatprep.subr.bf16.mxu0 0
    %1024 = vmatpush1.bf16.msra.mxu0 0
    %1025 = vmatprep.subr.bf16.mxu0 0
    %1026 = vmatpush1.bf16.msra.mxu0 0
    %1027 = vmatprep.subr.bf16.mxu0 0
    %1028 = vmatpush1.bf16.msra.mxu0 0
    %1029 = vmatprep.subr.bf16.mxu0 0
    %1030 = vmatpush1.bf16.msra.mxu0 0
    %1031 = vmatprep.subr.bf16.mxu0 0
    %1032 = vmatpush1.bf16.msra.mxu0 0
    %1033 = vmatprep.subr.bf16.mxu0 0
    %1034 = vmatpush1.bf16.msra.mxu0 %v993
    %1035 = vmatprep.subr.bf16.mxu0 0
    %1036 = vmatpush2.bf16.msra.mxu0 0
    %1037 = vmatprep.subr.bf16.mxu0 0
    %1038 = vmatpush2.bf16.msra.mxu0 0
    %1039 = vmatprep.subr.bf16.mxu0 0
    %1040 = vmatpush2.bf16.msra.mxu0 0
    %1041 = vmatprep.subr.bf16.mxu0 0
    %1042 = vmatpush2.bf16.msra.mxu0 0
    %1043 = vmatprep.subr.bf16.mxu0 0
    %1044 = vmatpush2.bf16.msra.mxu0 0
    %1045 = vmatprep.subr.bf16.mxu0 0
    %1046 = vmatpush2.bf16.msra.mxu0 0
    %1047 = vmatprep.subr.bf16.mxu0 0
    %1048 = vmatpush2.bf16.msra.mxu0 0
    %1049 = vmatprep.subr.bf16.mxu0 0
    %1050 = vmatpush2.bf16.msra.mxu0 0
    %1051 = vmatprep.mubr.bf16.mxu0 0
    %1052 = vmatmul.mubr.bf16.gmra.mxu0 %v1011
    %v1053 = vpop.f32.mrf.mxu0
    %v1054 = vadd.f32 0.0, %v1053
    %v1055 = vpop.f32.mrf.mxu0
    %v1056 = vpop.f32.mrf.mxu0
    %v1057 = vadd.f32 0.0, %v1056
    %v1058 = vpop.f32.mrf.mxu0
    %1059 = vmatprep.mubr.bf16.mxu0 0
    %1060 = vmatmul.mubr.bf16.gmra.mxu0 %v1014
    %v1061 = vpop.f32.mrf.mxu0
    %v1062 = vadd.f32 0.0, %v1061
    %v1063 = vpop.f32.mrf.mxu0
    %v1064 = vpop.f32.mrf.mxu0
    %v1065 = vadd.f32 0.0, %v1064
    %v1066 = vpop.f32.mrf.mxu0
    %1067 = vmatprep.mubr.bf16.mxu0 0
    %1068 = vmatmul.mubr.bf16.gmra.mxu0 %v1017
    %v1069 = vpop.f32.mrf.mxu0
    %v1070 = vadd.f32 0.0, %v1069
    %v1071 = vpop.f32.mrf.mxu0
    %v1072 = vpop.f32.mrf.mxu0
    %v1073 = vadd.f32 0.0, %v1072
    %v1074 = vpop.f32.mrf.mxu0
    %1075 = vdwg.mxu0
    %v1076 = vld [vmem:[%s1 + $0x180] sm:$0xf]
    %v1077 = vld [vmem:[%s1 + $0x184] sm:$0xf]
    %v1078 = vld [vmem:[%s1 + $0x188] sm:$0xf]
    %v1079 = vld [vmem:[%s1 + $0x18c] sm:$0xf]
    %v1080 = vld [vmem:[%s1 + $0x190] sm:$0xf]
    %v1081 = vld [vmem:[%s1 + $0x194] sm:$0xf]
    %v1082 = vld [vmem:[%s1 + $0x198] sm:$0xf]
    %v1083 = vld [vmem:[%s1 + $0x19c] sm:$0xf]
    %v1084 = vld [vmem:[%s1 + $0x1a0] sm:$0xf]
    %v1085 = vld [vmem:[%s1 + $0x1a4] sm:$0xf]
    %v1086 = vld [vmem:[%s1 + $0x1a8] sm:$0xf]
    %v1087 = vld [vmem:[%s1 + $0x1ac] sm:$0xf]
    %v1088 = vld [vmem:[%s1 + $0x1b0] sm:$0xf]
    %v1089 = vld [vmem:[%s1 + $0x1b4] sm:$0xf]
    %v1090 = vld [vmem:[%s1 + $0x1b8] sm:$0xf]
    %v1091 = vld [vmem:[%s1 + $0x1bc] sm:$0xf]
    %v1092 = vld [vmem:[%s1 + $0x1c0] sm:$0xf]
    %v1093 = vld [vmem:[%s1 + $0x1c4] sm:$0xf]
    %v1094 = vld [vmem:[%s1 + $0x1c8] sm:$0xf]
    %v1095 = vld [vmem:[%s1 + $0x1cc] sm:$0xf]
    %v1096 = vld [vmem:[%s1 + $0x1d0] sm:$0xf]
    %v1097 = vld [vmem:[%s1 + $0x1d4] sm:$0xf]
    %v1098 = vld [vmem:[%s1 + $0x1d8] sm:$0xf]
    %v1099 = vld [vmem:[%s1 + $0x1dc] sm:$0xf]
    %v1100 = vld [vmem:[%s1 + $0x1e0] sm:$0xf]
    %v1101 = vld [vmem:[%s1 + $0x1e4] sm:$0xf]
    %v1102 = vld [vmem:[%s1 + $0x1e8] sm:$0xf]
    %v1103 = vld [vmem:[%s1 + $0x1ec] sm:$0xf]
    %v1104 = vld [vmem:[%s1 + $0x1f0] sm:$0xf]
    %v1105 = vld [vmem:[%s1 + $0x1f4] sm:$0xf]
    %v1106 = vld [vmem:[%s1 + $0x1f8] sm:$0xf]
    %v1107 = vld [vmem:[%s1 + $0x1fc] sm:$0xf]
    %v1108 = vld [vmem:[%s1 + $0x200] sm:$0xf]
    %v1109 = vld [vmem:[%s1 + $0x204] sm:$0xf]
    %v1110 = vld [vmem:[%s1 + $0x208] sm:$0xf]
    %v1111 = vld [vmem:[%s1 + $0x20c] sm:$0xf]
    %v1112 = vld [vmem:[%s1 + $0x210] sm:$0xf]
    %v1113 = vld [vmem:[%s1 + $0x214] sm:$0xf]
    %v1114 = vld [vmem:[%s1 + $0x218] sm:$0xf]
    %v1115 = vld [vmem:[%s1 + $0x21c] sm:$0xf]
    %v1116 = vld [vmem:[%s1 + $0x220] sm:$0xf]
    %v1117 = vld [vmem:[%s1 + $0x224] sm:$0xf]
    %v1118 = vld [vmem:[%s1 + $0x228] sm:$0xf]
    %v1119 = vld [vmem:[%s1 + $0x22c] sm:$0xf]
    %v1120 = vld [vmem:[%s1 + $0x230] sm:$0xf]
    %v1121 = vld [vmem:[%s1 + $0x234] sm:$0xf]
    %v1122 = vld [vmem:[%s1 + $0x238] sm:$0xf]
    %v1123 = vld [vmem:[%s1 + $0x23c] sm:$0xf]
    %v1124 = vpack.c.bf16 %v1057, %v1054
    %v1125 = vpack.c.bf16 %v1065, %v1062
    %v1126 = vpack.c.bf16 %v1073, %v1070
    %v1127 = vld [vmem:[%s3 + $0x3] ss:$0 sm:$0xff]
    %v1176 = vunpack.c.l.b16 %v1076
    %v1177 = vunpack.c.l.b16 %v1077
    %v1178 = vunpack.c.l.b16 %v1078
    %v1179 = vunpack.c.l.b16 %v1079
    %v1180 = vunpack.c.l.b16 %v1080
    %v1181 = vunpack.c.l.b16 %v1081
    %v1182 = vunpack.c.l.b16 %v1082
    %v1183 = vunpack.c.l.b16 %v1083
    %v1184 = vunpack.c.l.b16 %v1084
    %v1185 = vunpack.c.l.b16 %v1085
    %v1186 = vunpack.c.l.b16 %v1086
    %v1187 = vunpack.c.l.b16 %v1087
    %v1188 = vunpack.c.l.b16 %v1088
    %v1189 = vunpack.c.l.b16 %v1089
    %v1190 = vunpack.c.l.b16 %v1090
    %v1191 = vunpack.c.l.b16 %v1091
    %v1192 = vunpack.c.l.b16 %v1092
    %v1193 = vunpack.c.l.b16 %v1093
    %v1194 = vunpack.c.l.b16 %v1094
    %v1195 = vunpack.c.l.b16 %v1095
    %v1196 = vunpack.c.l.b16 %v1096
    %v1197 = vunpack.c.l.b16 %v1097
    %v1198 = vunpack.c.l.b16 %v1098
    %v1199 = vunpack.c.l.b16 %v1099
    %v1200 = vunpack.c.l.b16 %v1100
    %v1201 = vunpack.c.l.b16 %v1101
    %v1202 = vunpack.c.l.b16 %v1102
    %v1203 = vunpack.c.l.b16 %v1103
    %v1204 = vunpack.c.l.b16 %v1104
    %v1205 = vunpack.c.l.b16 %v1105
    %v1206 = vunpack.c.l.b16 %v1106
    %v1207 = vunpack.c.l.b16 %v1107
    %v1208 = vunpack.c.l.b16 %v1108
    %v1209 = vunpack.c.l.b16 %v1109
    %v1210 = vunpack.c.l.b16 %v1110
    %v1211 = vunpack.c.l.b16 %v1111
    %v1212 = vunpack.c.l.b16 %v1112
    %v1213 = vunpack.c.l.b16 %v1113
    %v1214 = vunpack.c.l.b16 %v1114
    %v1215 = vunpack.c.l.b16 %v1115
    %v1216 = vunpack.c.l.b16 %v1116
    %v1217 = vunpack.c.l.b16 %v1117
    %v1218 = vunpack.c.l.b16 %v1118
    %v1219 = vunpack.c.l.b16 %v1119
    %v1220 = vunpack.c.l.b16 %v1120
    %v1221 = vunpack.c.l.b16 %v1121
    %v1222 = vunpack.c.l.b16 %v1122
    %v1223 = vunpack.c.l.b16 %v1123
    %v1224 = vpack.c.b16 %v1177, %v1176
    %v1225 = vpack.c.b16 %v1179, %v1178
    %v1226 = vpack.c.b16 %v1181, %v1180
    %v1227 = vpack.c.b16 %v1183, %v1182
    %v1228 = vpack.c.b16 %v1185, %v1184
    %v1229 = vpack.c.b16 %v1187, %v1186
    %v1230 = vpack.c.b16 %v1189, %v1188
    %v1231 = vpack.c.b16 %v1191, %v1190
    %v1232 = vpack.c.b16 %v1193, %v1192
    %v1233 = vpack.c.b16 %v1195, %v1194
    %v1234 = vpack.c.b16 %v1197, %v1196
    %v1235 = vpack.c.b16 %v1199, %v1198
    %v1236 = vpack.c.b16 %v1201, %v1200
    %v1237 = vpack.c.b16 %v1203, %v1202
    %v1238 = vpack.c.b16 %v1205, %v1204
    %v1239 = vpack.c.b16 %v1207, %v1206
    %v1240 = vpack.c.b16 %v1209, %v1208
    %v1241 = vpack.c.b16 %v1211, %v1210
    %v1242 = vpack.c.b16 %v1213, %v1212
    %v1243 = vpack.c.b16 %v1215, %v1214
    %v1244 = vpack.c.b16 %v1217, %v1216
    %v1245 = vpack.c.b16 %v1219, %v1218
    %v1246 = vpack.c.b16 %v1221, %v1220
    %v1247 = vpack.c.b16 %v1223, %v1222
    %1272 = vmatprep.subr.bf16.mxu0 0
    %1273 = vmatpush1.bf16.msra.mxu0 %v1231
    %1274 = vmatprep.subr.bf16.mxu0 0
    %1275 = vmatpush1.bf16.msra.mxu0 %v1230
    %1276 = vmatprep.subr.bf16.mxu0 0
    %1277 = vmatpush1.bf16.msra.mxu0 %v1229
    %1278 = vmatprep.subr.bf16.mxu0 0
    %1279 = vmatpush1.bf16.msra.mxu0 %v1228
    %1280 = vmatprep.subr.bf16.mxu0 0
    %1281 = vmatpush1.bf16.msra.mxu0 %v1227
    %1282 = vmatprep.subr.bf16.mxu0 0
    %1283 = vmatpush1.bf16.msra.mxu0 %v1226
    %1284 = vmatprep.subr.bf16.mxu0 0
    %1285 = vmatpush1.bf16.msra.mxu0 %v1225
    %1286 = vmatprep.subr.bf16.mxu0 0
    %1287 = vmatpush1.bf16.msra.mxu0 %v1224
    %1288 = vmatprep.subr.bf16.mxu0 0
    %1289 = vmatpush2.bf16.msra.mxu0 %v1239
    %1290 = vmatprep.subr.bf16.mxu0 0
    %1291 = vmatpush2.bf16.msra.mxu0 %v1238
    %1292 = vmatprep.subr.bf16.mxu0 0
    %1293 = vmatpush2.bf16.msra.mxu0 %v1237
    %1294 = vmatprep.subr.bf16.mxu0 0
    %1295 = vmatpush2.bf16.msra.mxu0 %v1236
    %1296 = vmatprep.subr.bf16.mxu0 0
    %1297 = vmatpush2.bf16.msra.mxu0 %v1235
    %1298 = vmatprep.subr.bf16.mxu0 0
    %1299 = vmatpush2.bf16.msra.mxu0 %v1234
    %1300 = vmatprep.subr.bf16.mxu0 0
    %1301 = vmatpush2.bf16.msra.mxu0 %v1233
    %1302 = vmatprep.subr.bf16.mxu0 0
    %1303 = vmatpush2.bf16.msra.mxu0 %v1232
    %1304 = vmatprep.mubr.bf16.mxu0 %v1125
    %1305 = vmatmul.mubr.bf16.gmra.mxu0 %v1124
    %v1306 = vpop.f32.mrf.mxu0
    %v1307 = vadd.f32 %v1127, %v1306
    %v1308 = vpop.f32.mrf.mxu0
    %v1309 = vpop.f32.mrf.mxu0
    %v1310 = vadd.f32 %v1127, %v1309
    %v1311 = vpop.f32.mrf.mxu0
    %1312 = vdwg.mxu0
    %1313 = vmatprep.subr.bf16.mxu0 0
    %1314 = vmatpush1.bf16.msra.mxu0 %v1247
    %1315 = vmatprep.subr.bf16.mxu0 0
    %1316 = vmatpush1.bf16.msra.mxu0 %v1246
    %1317 = vmatprep.subr.bf16.mxu0 0
    %1318 = vmatpush1.bf16.msra.mxu0 %v1245
    %1319 = vmatprep.subr.bf16.mxu0 0
    %1320 = vmatpush1.bf16.msra.mxu0 %v1244
    %1321 = vmatprep.subr.bf16.mxu0 0
    %1322 = vmatpush1.bf16.msra.mxu0 %v1243
    %1323 = vmatprep.subr.bf16.mxu0 0
    %1324 = vmatpush1.bf16.msra.mxu0 %v1242
    %1325 = vmatprep.subr.bf16.mxu0 0
    %1326 = vmatpush1.bf16.msra.mxu0 %v1241
    %1327 = vmatprep.subr.bf16.mxu0 0
    %1328 = vmatpush1.bf16.msra.mxu0 %v1240
    %1329 = vmatprep.subr.bf16.mxu0 0
    %1330 = vmatpush2.bf16.msra.mxu0 0
    %1331 = vmatprep.subr.bf16.mxu0 0
    %1332 = vmatpush2.bf16.msra.mxu0 0
    %1333 = vmatprep.subr.bf16.mxu0 0
    %1334 = vmatpush2.bf16.msra.mxu0 0
    %1335 = vmatprep.subr.bf16.mxu0 0
    %1336 = vmatpush2.bf16.msra.mxu0 0
    %1337 = vmatprep.subr.bf16.mxu0 0
    %1338 = vmatpush2.bf16.msra.mxu0 0
    %1339 = vmatprep.subr.bf16.mxu0 0
    %1340 = vmatpush2.bf16.msra.mxu0 0
    %1341 = vmatprep.subr.bf16.mxu0 0
    %1342 = vmatpush2.bf16.msra.mxu0 0
    %1343 = vmatprep.subr.bf16.mxu0 0
    %1344 = vmatpush2.bf16.msra.mxu0 0
    %1345 = vmatprep.mubr.bf16.mxu0 0
    %1346 = vmatmul.mubr.bf16.gmra.mxu0 %v1126
    %v1347 = vpop.f32.mrf.mxu0
    %v1348 = vadd.f32 %v1307, %v1347
    %v1349 = vpop.f32.mrf.mxu0
    %v1350 = vpop.f32.mrf.mxu0
    %v1351 = vadd.f32 %v1310, %v1350
    %v1352 = vpop.f32.mrf.mxu0
    %1353 = vdwg.mxu0
    %vm1354 = vcmp.ge.f32.partialorder %v1348, 0.0
    %vm1355 = vcmp.ge.f32.partialorder %v1351, 0.0
    %v1356 = vmul.f32 %v1348, 0.1
    %v1357 = vmul.f32 %v1351, 0.1
    %v1358 = vsel %vm1354, %v1348, %v1356
    %v1359 = vsel %vm1355, %v1351, %v1357
    %v1360 = vld [vmem:[#allocation2] sm:$0xff]
    %v1361 = vld [vmem:[#allocation2 + $0x8] sm:$0xff]
    %v1362 = vld [vmem:[#allocation2 + $0x10] sm:$0xff]
    %v1363 = vld [vmem:[#allocation2 + $0x18] sm:$0xff]
    %v1364 = vld [vmem:[#allocation2 + $0x20] sm:$0xff]
    %v1365 = vld [vmem:[#allocation2 + $0x28] sm:$0xff]
    %v1366 = vld [vmem:[#allocation2 + $0x30] sm:$0xff]
    %v1367 = vld [vmem:[#allocation2 + $0x38] sm:$0xff]
    %v1368 = vld [vmem:[#allocation2 + $0x40] sm:$0xff]
    %v1369 = vld [vmem:[#allocation2 + $0x48] sm:$0xff]
    %v1370 = vld [vmem:[#allocation2 + $0x50] sm:$0xff]
    %v1371 = vld [vmem:[#allocation2 + $0x58] sm:$0xff]
    %v1372 = vld [vmem:[#allocation2 + $0x60] sm:$0xff]
    %v1373 = vld [vmem:[#allocation2 + $0x68] sm:$0xff]
    %v1374 = vld [vmem:[#allocation2 + $0x70] sm:$0xff]
    %v1375 = vld [vmem:[#allocation2 + $0x78] sm:$0xff]
    %v1376 = vpack.c.bf16 %v1359, %v1358
    %v1377 = vld [vmem:[#allocation2 + $0x80] sm:$0xff]
    %v1378 = vld [vmem:[#allocation2 + $0x88] sm:$0xff]
    %v1379 = vld [vmem:[#allocation2 + $0x90] sm:$0xff]
    %v1380 = vld [vmem:[#allocation2 + $0x98] sm:$0xff]
    %v1381 = vld [vmem:[#allocation2 + $0xa0] sm:$0xff]
    %v1382 = vld [vmem:[#allocation2 + $0xa8] sm:$0xff]
    %v1383 = vld [vmem:[#allocation2 + $0xb0] sm:$0xff]
    %v1384 = vld [vmem:[#allocation2 + $0xb8] sm:$0xff]
    %v1385 = vld [vmem:[#allocation2 + $0xc0] sm:$0xff]
    %v1386 = vld [vmem:[#allocation2 + $0xc8] sm:$0xff]
    %v1387 = vld [vmem:[#allocation2 + $0xd0] sm:$0xff]
    %v1388 = vld [vmem:[#allocation2 + $0xd8] sm:$0xff]
    %v1389 = vld [vmem:[#allocation2 + $0xe0] sm:$0xff]
    %v1390 = vld [vmem:[#allocation2 + $0xe8] sm:$0xff]
    %v1391 = vld [vmem:[#allocation2 + $0xf0] sm:$0xff]
    %v1392 = vld [vmem:[#allocation2 + $0xf8] sm:$0xff]
    %v1409 = vunpack.c.l.b16 %v1377
    %v1410 = vunpack.c.h.b16 %v1377
    %v1411 = vunpack.c.l.b16 %v1378
    %v1412 = vunpack.c.h.b16 %v1378
    %v1413 = vunpack.c.l.b16 %v1379
    %v1414 = vunpack.c.h.b16 %v1379
    %v1415 = vunpack.c.l.b16 %v1380
    %v1416 = vunpack.c.h.b16 %v1380
    %v1417 = vunpack.c.l.b16 %v1381
    %v1418 = vunpack.c.h.b16 %v1381
    %v1419 = vunpack.c.l.b16 %v1382
    %v1420 = vunpack.c.h.b16 %v1382
    %v1421 = vunpack.c.l.b16 %v1383
    %v1422 = vunpack.c.h.b16 %v1383
    %v1423 = vunpack.c.l.b16 %v1384
    %v1424 = vunpack.c.h.b16 %v1384
    %v1425 = vunpack.c.l.b16 %v1385
    %v1426 = vunpack.c.h.b16 %v1385
    %v1427 = vunpack.c.l.b16 %v1386
    %v1428 = vunpack.c.h.b16 %v1386
    %v1429 = vunpack.c.l.b16 %v1387
    %v1430 = vunpack.c.h.b16 %v1387
    %v1431 = vunpack.c.l.b16 %v1388
    %v1432 = vunpack.c.h.b16 %v1388
    %v1433 = vunpack.c.l.b16 %v1389
    %v1434 = vunpack.c.h.b16 %v1389
    %v1435 = vunpack.c.l.b16 %v1390
    %v1436 = vunpack.c.h.b16 %v1390
    %v1437 = vunpack.c.l.b16 %v1391
    %v1438 = vunpack.c.h.b16 %v1391
    %v1439 = vunpack.c.l.b16 %v1392
    %v1440 = vunpack.c.h.b16 %v1392
    %v1441 = vpack.c.b16 %v1411, %v1409
    %v1442 = vpack.c.b16 %v1412, %v1410
    %v1443 = vpack.c.b16 %v1415, %v1413
    %v1444 = vpack.c.b16 %v1416, %v1414
    %v1445 = vpack.c.b16 %v1419, %v1417
    %v1446 = vpack.c.b16 %v1420, %v1418
    %v1447 = vpack.c.b16 %v1423, %v1421
    %v1448 = vpack.c.b16 %v1424, %v1422
    %v1449 = vpack.c.b16 %v1427, %v1425
    %v1450 = vpack.c.b16 %v1428, %v1426
    %v1451 = vpack.c.b16 %v1431, %v1429
    %v1452 = vpack.c.b16 %v1432, %v1430
    %v1453 = vpack.c.b16 %v1435, %v1433
    %v1454 = vpack.c.b16 %v1436, %v1434
    %v1455 = vpack.c.b16 %v1439, %v1437
    %v1456 = vpack.c.b16 %v1440, %v1438
    %1473 = vmatprep.subr.bf16.mxu0 %v1456
    %1474 = vmatpush1.bf16.msra.mxu0 %v1455
    %1475 = vmatprep.subr.bf16.mxu0 %v1454
    %1476 = vmatpush1.bf16.msra.mxu0 %v1453
    %1477 = vmatprep.subr.bf16.mxu0 %v1452
    %1478 = vmatpush1.bf16.msra.mxu0 %v1451
    %1479 = vmatprep.subr.bf16.mxu0 %v1450
    %1480 = vmatpush1.bf16.msra.mxu0 %v1449
    %1481 = vmatprep.subr.bf16.mxu0 %v1448
    %1482 = vmatpush1.bf16.msra.mxu0 %v1447
    %1483 = vmatprep.subr.bf16.mxu0 %v1446
    %1484 = vmatpush1.bf16.msra.mxu0 %v1445
    %1485 = vmatprep.subr.bf16.mxu0 %v1444
    %1486 = vmatpush1.bf16.msra.mxu0 %v1443
    %1487 = vmatprep.subr.bf16.mxu0 %v1442
    %1488 = vmatpush1.bf16.msra.mxu0 %v1441
    %1489 = vmatprep.subr.bf16.mxu0 0
    %1490 = vmatpush2.bf16.msra.mxu0 0
    %1491 = vmatprep.subr.bf16.mxu0 0
    %1492 = vmatpush2.bf16.msra.mxu0 0
    %1493 = vmatprep.subr.bf16.mxu0 0
    %1494 = vmatpush2.bf16.msra.mxu0 0
    %1495 = vmatprep.subr.bf16.mxu0 0
    %1496 = vmatpush2.bf16.msra.mxu0 0
    %1497 = vmatprep.subr.bf16.mxu0 0
    %1498 = vmatpush2.bf16.msra.mxu0 0
    %1499 = vmatprep.subr.bf16.mxu0 0
    %1500 = vmatpush2.bf16.msra.mxu0 0
    %1501 = vmatprep.subr.bf16.mxu0 0
    %1502 = vmatpush2.bf16.msra.mxu0 0
    %1503 = vmatprep.subr.bf16.mxu0 0
    %1504 = vmatpush2.bf16.msra.mxu0 0
    %1505 = vmatprep.mubr.bf16.mxu0 0
    %1506 = vmatmul.mubr.bf16.gmra.mxu0 %v993
    %v1507 = vpop.f32.mrf.mxu0
    %v1508 = vadd.f32 0.0, %v1507
    %v1509 = vpop.f32.mrf.mxu0
    %v1510 = vadd.f32 0.0, %v1509
    %v1511 = vpop.f32.mrf.mxu0
    %v1512 = vadd.f32 0.0, %v1511
    %v1513 = vpop.f32.mrf.mxu0
    %v1514 = vadd.f32 0.0, %v1513
    %1515 = vdwg.mxu0
    %v1532 = vunpack.c.l.b16 %v1360
    %v1533 = vunpack.c.h.b16 %v1360
    %v1534 = vunpack.c.l.b16 %v1361
    %v1535 = vunpack.c.h.b16 %v1361
    %v1536 = vunpack.c.l.b16 %v1362
    %v1537 = vunpack.c.h.b16 %v1362
    %v1538 = vunpack.c.l.b16 %v1363
    %v1539 = vunpack.c.h.b16 %v1363
    %v1540 = vunpack.c.l.b16 %v1364
    %v1541 = vunpack.c.h.b16 %v1364
    %v1542 = vunpack.c.l.b16 %v1365
    %v1543 = vunpack.c.h.b16 %v1365
    %v1544 = vunpack.c.l.b16 %v1366
    %v1545 = vunpack.c.h.b16 %v1366
    %v1546 = vunpack.c.l.b16 %v1367
    %v1547 = vunpack.c.h.b16 %v1367
    %v1548 = vunpack.c.l.b16 %v1368
    %v1549 = vunpack.c.h.b16 %v1368
    %v1550 = vunpack.c.l.b16 %v1369
    %v1551 = vunpack.c.h.b16 %v1369
    %v1552 = vunpack.c.l.b16 %v1370
    %v1553 = vunpack.c.h.b16 %v1370
    %v1554 = vunpack.c.l.b16 %v1371
    %v1555 = vunpack.c.h.b16 %v1371
    %v1556 = vunpack.c.l.b16 %v1372
    %v1557 = vunpack.c.h.b16 %v1372
    %v1558 = vunpack.c.l.b16 %v1373
    %v1559 = vunpack.c.h.b16 %v1373
    %v1560 = vunpack.c.l.b16 %v1374
    %v1561 = vunpack.c.h.b16 %v1374
    %v1562 = vunpack.c.l.b16 %v1375
    %v1563 = vunpack.c.h.b16 %v1375
    %v1564 = vpack.c.b16 %v1534, %v1532
    %v1565 = vpack.c.b16 %v1535, %v1533
    %v1566 = vpack.c.b16 %v1538, %v1536
    %v1567 = vpack.c.b16 %v1539, %v1537
    %v1568 = vpack.c.b16 %v1542, %v1540
    %v1569 = vpack.c.b16 %v1543, %v1541
    %v1570 = vpack.c.b16 %v1546, %v1544
    %v1571 = vpack.c.b16 %v1547, %v1545
    %v1572 = vpack.c.b16 %v1550, %v1548
    %v1573 = vpack.c.b16 %v1551, %v1549
    %v1574 = vpack.c.b16 %v1554, %v1552
    %v1575 = vpack.c.b16 %v1555, %v1553
    %v1576 = vpack.c.b16 %v1558, %v1556
    %v1577 = vpack.c.b16 %v1559, %v1557
    %v1578 = vpack.c.b16 %v1562, %v1560
    %v1579 = vpack.c.b16 %v1563, %v1561
    %1596 = vmatprep.subr.bf16.mxu0 %v1579
    %1597 = vmatpush1.bf16.msra.mxu0 %v1578
    %1598 = vmatprep.subr.bf16.mxu0 %v1577
    %1599 = vmatpush1.bf16.msra.mxu0 %v1576
    %1600 = vmatprep.subr.bf16.mxu0 %v1575
    %1601 = vmatpush1.bf16.msra.mxu0 %v1574
    %1602 = vmatprep.subr.bf16.mxu0 %v1573
    %1603 = vmatpush1.bf16.msra.mxu0 %v1572
    %1604 = vmatprep.subr.bf16.mxu0 %v1571
    %1605 = vmatpush1.bf16.msra.mxu0 %v1570
    %1606 = vmatprep.subr.bf16.mxu0 %v1569
    %1607 = vmatpush1.bf16.msra.mxu0 %v1568
    %1608 = vmatprep.subr.bf16.mxu0 %v1567
    %1609 = vmatpush1.bf16.msra.mxu0 %v1566
    %1610 = vmatprep.subr.bf16.mxu0 %v1565
    %1611 = vmatpush1.bf16.msra.mxu0 %v1564
    %1612 = vmatprep.subr.bf16.mxu0 0
    %1613 = vmatpush2.bf16.msra.mxu0 0
    %1614 = vmatprep.subr.bf16.mxu0 0
    %1615 = vmatpush2.bf16.msra.mxu0 0
    %1616 = vmatprep.subr.bf16.mxu0 0
    %1617 = vmatpush2.bf16.msra.mxu0 0
    %1618 = vmatprep.subr.bf16.mxu0 0
    %1619 = vmatpush2.bf16.msra.mxu0 0
    %1620 = vmatprep.subr.bf16.mxu0 0
    %1621 = vmatpush2.bf16.msra.mxu0 0
    %1622 = vmatprep.subr.bf16.mxu0 0
    %1623 = vmatpush2.bf16.msra.mxu0 0
    %1624 = vmatprep.subr.bf16.mxu0 0
    %1625 = vmatpush2.bf16.msra.mxu0 0
    %1626 = vmatprep.subr.bf16.mxu0 0
    %1627 = vmatpush2.bf16.msra.mxu0 0
    %1628 = vmatprep.mubr.bf16.mxu0 0
    %1629 = vmatmul.mubr.bf16.gmra.mxu0 %v1376
    %v1630 = vpop.f32.mrf.mxu0
    %v1631 = vadd.f32 %v1508, %v1630
    %v1632 = vpop.f32.mrf.mxu0
    %v1633 = vadd.f32 %v1510, %v1632
    %v1634 = vpop.f32.mrf.mxu0
    %v1635 = vadd.f32 %v1512, %v1634
    %v1636 = vpop.f32.mrf.mxu0
    %v1637 = vadd.f32 %v1514, %v1636
    %1638 = vdwg.mxu0
    %s1639 = scalar_lea.vmem %s3, 4
    %v1640 = vld [vmem:[%s1639] ss:$8 sm:$0x3]
    %v1642 = vlaneseq
    %v1643 = vshrl.u32 %v1642, 7
    %v1644 = vsub.s32 0, %v1643
    %v1645 = vrot.slane %v1640, %v1644
    %v1646 = vlaneseq
    %v1647 = vshrl.u32 %v1646, 7
    %v1648 = vsub.s32 1, %v1647
    %v1649 = vrot.slane %v1640, %v1648
    %v1652 = vadd.f32 %v1631, %v1645
    %v1653 = vadd.f32 %v1633, %v1649
    %v1654 = vadd.f32 %v1635, %v1645
    %v1655 = vadd.f32 %v1637, %v1649
    %vm1656 = vcmp.ge.f32.partialorder %v1652, 0.0
    %vm1657 = vcmp.ge.f32.partialorder %v1653, 0.0
    %vm1658 = vcmp.ge.f32.partialorder %v1654, 0.0
    %vm1659 = vcmp.ge.f32.partialorder %v1655, 0.0
    %v1660 = vmul.f32 %v1652, 0.1
    %v1661 = vmul.f32 %v1653, 0.1
    %v1662 = vmul.f32 %v1654, 0.1
    %v1663 = vmul.f32 %v1655, 0.1
    %v1664 = vsel %vm1656, %v1652, %v1660
    %v1665 = vsel %vm1657, %v1653, %v1661
    %v1666 = vsel %vm1658, %v1654, %v1662
    %v1667 = vsel %vm1659, %v1655, %v1663
    %v1668 = vld [vmem:[#allocation2 + $0x100] sm:$0xff]
    %v1669 = vld [vmem:[#allocation2 + $0x108] sm:$0xff]
    %v1670 = vld [vmem:[#allocation2 + $0x110] sm:$0xff]
    %v1671 = vld [vmem:[#allocation2 + $0x118] sm:$0xff]
    %v1672 = vld [vmem:[#allocation2 + $0x120] sm:$0xff]
    %v1673 = vld [vmem:[#allocation2 + $0x128] sm:$0xff]
    %v1674 = vld [vmem:[#allocation2 + $0x130] sm:$0xff]
    %v1675 = vld [vmem:[#allocation2 + $0x138] sm:$0xff]
    %v1676 = vld [vmem:[#allocation2 + $0x140] sm:$0xff]
    %v1677 = vld [vmem:[#allocation2 + $0x148] sm:$0xff]
    %v1678 = vld [vmem:[#allocation2 + $0x150] sm:$0xff]
    %v1679 = vld [vmem:[#allocation2 + $0x158] sm:$0xff]
    %v1680 = vld [vmem:[#allocation2 + $0x160] sm:$0xff]
    %v1681 = vld [vmem:[#allocation2 + $0x168] sm:$0xff]
    %v1682 = vld [vmem:[#allocation2 + $0x170] sm:$0xff]
    %v1683 = vld [vmem:[#allocation2 + $0x178] sm:$0xff]
    %v1684 = vld [vmem:[#allocation2 + $0x180] sm:$0xff]
    %v1685 = vld [vmem:[#allocation2 + $0x188] sm:$0xff]
    %v1686 = vld [vmem:[#allocation2 + $0x190] sm:$0xff]
    %v1687 = vld [vmem:[#allocation2 + $0x198] sm:$0xff]
    %v1688 = vld [vmem:[#allocation2 + $0x1a0] sm:$0xff]
    %v1689 = vld [vmem:[#allocation2 + $0x1a8] sm:$0xff]
    %v1690 = vld [vmem:[#allocation2 + $0x1b0] sm:$0xff]
    %v1691 = vld [vmem:[#allocation2 + $0x1b8] sm:$0xff]
    %v1692 = vld [vmem:[#allocation2 + $0x1c0] sm:$0xff]
    %v1693 = vld [vmem:[#allocation2 + $0x1c8] sm:$0xff]
    %v1694 = vld [vmem:[#allocation2 + $0x1d0] sm:$0xff]
    %v1695 = vld [vmem:[#allocation2 + $0x1d8] sm:$0xff]
    %v1696 = vld [vmem:[#allocation2 + $0x1e0] sm:$0xff]
    %v1697 = vld [vmem:[#allocation2 + $0x1e8] sm:$0xff]
    %v1698 = vld [vmem:[#allocation2 + $0x1f0] sm:$0xff]
    %v1699 = vld [vmem:[#allocation2 + $0x1f8] sm:$0xff]
    %v1700 = vpack.c.bf16 %v1666, %v1664
    %v1701 = vpack.c.bf16 %v1667, %v1665
    %s1702 = scalar_lea.vmem %s3, 5
    %v1703 = vld [vmem:[%s1702] ss:$8 sm:$0x3]
    %v1705 = vlaneseq
    %v1706 = vshrl.u32 %v1705, 7
    %v1707 = vsub.s32 0, %v1706
    %v1708 = vrot.slane %v1703, %v1707
    %v1709 = vlaneseq
    %v1710 = vshrl.u32 %v1709, 7
    %v1711 = vsub.s32 1, %v1710
    %v1712 = vrot.slane %v1703, %v1711
    %v1747 = vunpack.c.l.b16 %v1668
    %v1748 = vunpack.c.h.b16 %v1668
    %v1749 = vunpack.c.l.b16 %v1669
    %v1750 = vunpack.c.h.b16 %v1669
    %v1751 = vunpack.c.l.b16 %v1670
    %v1752 = vunpack.c.h.b16 %v1670
    %v1753 = vunpack.c.l.b16 %v1671
    %v1754 = vunpack.c.h.b16 %v1671
    %v1755 = vunpack.c.l.b16 %v1672
    %v1756 = vunpack.c.h.b16 %v1672
    %v1757 = vunpack.c.l.b16 %v1673
    %v1758 = vunpack.c.h.b16 %v1673
    %v1759 = vunpack.c.l.b16 %v1674
    %v1760 = vunpack.c.h.b16 %v1674
    %v1761 = vunpack.c.l.b16 %v1675
    %v1762 = vunpack.c.h.b16 %v1675
    %v1763 = vunpack.c.l.b16 %v1676
    %v1764 = vunpack.c.h.b16 %v1676
    %v1765 = vunpack.c.l.b16 %v1677
    %v1766 = vunpack.c.h.b16 %v1677
    %v1767 = vunpack.c.l.b16 %v1678
    %v1768 = vunpack.c.h.b16 %v1678
    %v1769 = vunpack.c.l.b16 %v1679
    %v1770 = vunpack.c.h.b16 %v1679
    %v1771 = vunpack.c.l.b16 %v1680
    %v1772 = vunpack.c.h.b16 %v1680
    %v1773 = vunpack.c.l.b16 %v1681
    %v1774 = vunpack.c.h.b16 %v1681
    %v1775 = vunpack.c.l.b16 %v1682
    %v1776 = vunpack.c.h.b16 %v1682
    %v1777 = vunpack.c.l.b16 %v1683
    %v1778 = vunpack.c.h.b16 %v1683
    %v1779 = vunpack.c.l.b16 %v1684
    %v1780 = vunpack.c.h.b16 %v1684
    %v1781 = vunpack.c.l.b16 %v1685
    %v1782 = vunpack.c.h.b16 %v1685
    %v1783 = vunpack.c.l.b16 %v1686
    %v1784 = vunpack.c.h.b16 %v1686
    %v1785 = vunpack.c.l.b16 %v1687
    %v1786 = vunpack.c.h.b16 %v1687
    %v1787 = vunpack.c.l.b16 %v1688
    %v1788 = vunpack.c.h.b16 %v1688
    %v1789 = vunpack.c.l.b16 %v1689
    %v1790 = vunpack.c.h.b16 %v1689
    %v1791 = vunpack.c.l.b16 %v1690
    %v1792 = vunpack.c.h.b16 %v1690
    %v1793 = vunpack.c.l.b16 %v1691
    %v1794 = vunpack.c.h.b16 %v1691
    %v1795 = vunpack.c.l.b16 %v1692
    %v1796 = vunpack.c.h.b16 %v1692
    %v1797 = vunpack.c.l.b16 %v1693
    %v1798 = vunpack.c.h.b16 %v1693
    %v1799 = vunpack.c.l.b16 %v1694
    %v1800 = vunpack.c.h.b16 %v1694
    %v1801 = vunpack.c.l.b16 %v1695
    %v1802 = vunpack.c.h.b16 %v1695
    %v1803 = vunpack.c.l.b16 %v1696
    %v1804 = vunpack.c.h.b16 %v1696
    %v1805 = vunpack.c.l.b16 %v1697
    %v1806 = vunpack.c.h.b16 %v1697
    %v1807 = vunpack.c.l.b16 %v1698
    %v1808 = vunpack.c.h.b16 %v1698
    %v1809 = vunpack.c.l.b16 %v1699
    %v1810 = vunpack.c.h.b16 %v1699
    %v1811 = vpack.c.b16 %v1749, %v1747
    %v1812 = vpack.c.b16 %v1750, %v1748
    %v1813 = vpack.c.b16 %v1753, %v1751
    %v1814 = vpack.c.b16 %v1754, %v1752
    %v1815 = vpack.c.b16 %v1757, %v1755
    %v1816 = vpack.c.b16 %v1758, %v1756
    %v1817 = vpack.c.b16 %v1761, %v1759
    %v1818 = vpack.c.b16 %v1762, %v1760
    %v1819 = vpack.c.b16 %v1765, %v1763
    %v1820 = vpack.c.b16 %v1766, %v1764
    %v1821 = vpack.c.b16 %v1769, %v1767
    %v1822 = vpack.c.b16 %v1770, %v1768
    %v1823 = vpack.c.b16 %v1773, %v1771
    %v1824 = vpack.c.b16 %v1774, %v1772
    %v1825 = vpack.c.b16 %v1777, %v1775
    %v1826 = vpack.c.b16 %v1778, %v1776
    %v1827 = vpack.c.b16 %v1781, %v1779
    %v1828 = vpack.c.b16 %v1782, %v1780
    %v1829 = vpack.c.b16 %v1785, %v1783
    %v1830 = vpack.c.b16 %v1786, %v1784
    %v1831 = vpack.c.b16 %v1789, %v1787
    %v1832 = vpack.c.b16 %v1790, %v1788
    %v1833 = vpack.c.b16 %v1793, %v1791
    %v1834 = vpack.c.b16 %v1794, %v1792
    %v1835 = vpack.c.b16 %v1797, %v1795
    %v1836 = vpack.c.b16 %v1798, %v1796
    %v1837 = vpack.c.b16 %v1801, %v1799
    %v1838 = vpack.c.b16 %v1802, %v1800
    %v1839 = vpack.c.b16 %v1805, %v1803
    %v1840 = vpack.c.b16 %v1806, %v1804
    %v1841 = vpack.c.b16 %v1809, %v1807
    %v1842 = vpack.c.b16 %v1810, %v1808
    %1875 = vmatprep.subr.bf16.mxu0 %v1826
    %1876 = vmatpush1.bf16.msra.mxu0 %v1825
    %1877 = vmatprep.subr.bf16.mxu0 %v1824
    %1878 = vmatpush1.bf16.msra.mxu0 %v1823
    %1879 = vmatprep.subr.bf16.mxu0 %v1822
    %1880 = vmatpush1.bf16.msra.mxu0 %v1821
    %1881 = vmatprep.subr.bf16.mxu0 %v1820
    %1882 = vmatpush1.bf16.msra.mxu0 %v1819
    %1883 = vmatprep.subr.bf16.mxu0 %v1818
    %1884 = vmatpush1.bf16.msra.mxu0 %v1817
    %1885 = vmatprep.subr.bf16.mxu0 %v1816
    %1886 = vmatpush1.bf16.msra.mxu0 %v1815
    %1887 = vmatprep.subr.bf16.mxu0 %v1814
    %1888 = vmatpush1.bf16.msra.mxu0 %v1813
    %1889 = vmatprep.subr.bf16.mxu0 %v1812
    %1890 = vmatpush1.bf16.msra.mxu0 %v1811
    %1891 = vmatprep.subr.bf16.mxu0 %v1842
    %1892 = vmatpush2.bf16.msra.mxu0 %v1841
    %1893 = vmatprep.subr.bf16.mxu0 %v1840
    %1894 = vmatpush2.bf16.msra.mxu0 %v1839
    %1895 = vmatprep.subr.bf16.mxu0 %v1838
    %1896 = vmatpush2.bf16.msra.mxu0 %v1837
    %1897 = vmatprep.subr.bf16.mxu0 %v1836
    %1898 = vmatpush2.bf16.msra.mxu0 %v1835
    %1899 = vmatprep.subr.bf16.mxu0 %v1834
    %1900 = vmatpush2.bf16.msra.mxu0 %v1833
    %1901 = vmatprep.subr.bf16.mxu0 %v1832
    %1902 = vmatpush2.bf16.msra.mxu0 %v1831
    %1903 = vmatprep.subr.bf16.mxu0 %v1830
    %1904 = vmatpush2.bf16.msra.mxu0 %v1829
    %1905 = vmatprep.subr.bf16.mxu0 %v1828
    %1906 = vmatpush2.bf16.msra.mxu0 %v1827
    %1907 = vmatprep.mubr.bf16.mxu0 %v1701
    %1908 = vmatmul.mubr.bf16.gmra.mxu0 %v1700
    %v1909 = vpop.f32.mrf.mxu0
    %v1910 = vadd.f32 %v1708, %v1909
    %v1911 = vpop.f32.mrf.mxu0
    %v1912 = vadd.f32 %v1712, %v1911
    %v1913 = vpop.f32.mrf.mxu0
    %v1914 = vadd.f32 %v1708, %v1913
    %v1915 = vpop.f32.mrf.mxu0
    %v1916 = vadd.f32 %v1712, %v1915
    %1917 = vdwg.mxu0
    %1918 = vst [vmem:[%s4] sm:$0xff] %v1910
    %1919 = vst [vmem:[%s4 + $0x8] sm:$0xff] %v1912
    %1920 = vst [vmem:[%s4 + $0x10] sm:$0xff] %v1914
    %1921 = vst [vmem:[%s4 + $0x18] sm:$0xff] %v1916
    // Predicated region
    $region22: #{forward.1} parent=1 // pred_check
      _
    $region23: #{forward.1} parent=1 // pred_check_branch
      %1923 = sbr.rel (0) target = $region25
    $region24: #{forward.1} parent=1 // pred_region
      _
    $region25: #{forward.1} parent=1 // pred_fallthru
      _
    // Predicated region
    $region26: #{forward.1} parent=1 // pred_check
      _
    $region27: #{forward.1} parent=1 // pred_check_branch
      %1925 = sbr.rel (0) target = $region29
    $region28: #{forward.1} parent=1 // pred_region
      _
    $region29: #{forward.1} parent=1 // pred_fallthru
      _
    %1926 = vsyncpa [#allocation3], 1

</llo_original>
